<compile_context>
chip_gen: v7x
topology: tpu7x:2x2x1
jax: 0.10.0
libtpu: 0.0.40
codegen_flags: <defaults>
</compile_context>

<pallas_src>
import jax
import jax.numpy as jnp
import numpy as np
from jax import lax
from jax.experimental import pallas as pl
from jax.experimental.pallas import tpu as pltpu

NEG_SLOPE = 0.01   # F.leaky_relu default negative slope
OUT_PAD = 128      # FC output dim (2) zero-padded to one full lane tile


def _round_up(x, m):
    return -(-x // m) * m


def _lrelu(x):
    return jnp.where(x > 0, x, NEG_SLOPE * x)


def _vad_kernel(x_ref, wconv_ref, b1_ref, wfc_ref, bfc_ref, out_ref):
    # conv (as a dense lane-aligned matmul) + bias + leaky_relu, f32 accumulate.
    h = jnp.dot(x_ref[...], wconv_ref[...], preferred_element_type=jnp.float32)
    h = _lrelu(h + b1_ref[...])                               # (B, Fp) f32
    # fully-connected head; output dim padded to 128 -> unmasked stores.
    logits = jnp.dot(h.astype(wfc_ref.dtype), wfc_ref[...],
                     preferred_element_type=jnp.float32)      # (B, 128)
    out_ref[...] = logits + bfc_ref[...]


def small_vad_forward(x_nhw, params, *, conv1_size, stride=1,
                      batch_norm=False, bn_params=None,
                      block_b=None, compute_dtype=jnp.bfloat16):
    """Fused SmallVad forward.

    params in PyTorch layout:
      w1  : (C1, 1, K, K)   conv1.weight (OIHW)
      b1  : (C1,)           conv1.bias
      wfc : (2, fc_size)    fc1.weight, fc_size = C1*H1*W1 (CHW flatten order)
      bfc : (2,)            fc1.bias
    bn_params (eval mode): (gamma, beta, running_mean, running_var, eps)
    """
    w1_pt, b1_pt, wfc_pt, bfc_pt = params
    N, H, W = x_nhw.shape
    K = conv1_size
    C1 = w1_pt.shape[0]
    H1 = (H - K) // stride + 1
    W1 = (W - K) // stride + 1
    F = C1 * H1 * W1
    assert wfc_pt.shape == (2, F), (wfc_pt.shape, F)

    # --- fold eval-mode BatchNorm2d(1) into the conv:  conv(s*x + t) =
    #     conv_{s*w}(x) + t*sum(w)  (VALID padding, single input channel). ----
    w1 = w1_pt.astype(jnp.float32)
    b1 = b1_pt.astype(jnp.float32)
    if batch_norm:
        gamma, beta, mean, var, eps = bn_params
        gamma = jnp.asarray(gamma, jnp.float32)
        beta = jnp.asarray(beta, jnp.float32)
        mean = jnp.asarray(mean, jnp.float32)
        var = jnp.asarray(var, jnp.float32)
        inv_std = 1.0 / jnp.sqrt(var + eps)
        scale = (gamma * inv_std).reshape(())
        shift = (beta - mean * gamma * inv_std).reshape(())
        b1 = b1 + shift * jnp.sum(w1, axis=(1, 2, 3))
        w1 = w1 * scale

    HW = H * W
    Fp = _round_up(F, 128)

    # --- conv as a single (HW, Fp) matrix: columns are the CHW-flattened conv
    #     responses to one-hot input pixels (exact by linearity). Built once in
    #     the wrapper; stride is absorbed here, nothing strided in-kernel. -----
    basis = jnp.eye(HW, dtype=jnp.float32).reshape(HW, 1, H, W)
    resp = lax.conv_general_dilated(
        basis, w1, window_strides=(stride, stride), padding='VALID',
        dimension_numbers=('NCHW', 'OIHW', 'NCHW'),
        precision=lax.Precision.HIGHEST)                      # (HW, C1, H1, W1)
    wconv = jnp.pad(resp.reshape(HW, F), ((0, 0), (0, Fp - F))).astype(compute_dtype)

    b1_row = jnp.pad(jnp.repeat(b1, H1 * W1), (0, Fp - F)).reshape(1, Fp)

    # FC weight: PyTorch CHW flatten order matches our feature order exactly;
    # zero rows for the Fp padding, zero columns for the 2 -> 128 output pad.
    wfc = jnp.pad(wfc_pt.astype(jnp.float32).T,
                  ((0, Fp - F), (0, OUT_PAD - 2))).astype(compute_dtype)   # (Fp, 128)
    bfc_row = jnp.pad(bfc_pt.astype(jnp.float32), (0, OUT_PAD - 2)).reshape(1, OUT_PAD)

    # --- batch blocking: B samples/grid step, multiple of 8 for sublane-aligned
    #     unmasked stores.  Sweep block_b upward (256-1024) for large N; on v7x
    #     prefer an even number of grid steps >= 2 (2 TensorCores). ------------
    if block_b is None:
        block_b = min(256, N)
    B = max(8, _round_up(block_b, 8))
    n_blocks = -(-N // B)
    N_pad = n_blocks * B

    x = x_nhw.astype(compute_dtype).reshape(N, HW)            # lane-dense input
    if N_pad != N:
        x = jnp.pad(x, ((0, N_pad - N), (0, 0)))

    grid_spec = pltpu.PrefetchScalarGridSpec(
        num_scalar_prefetch=0,
        grid=(n_blocks,),
        in_specs=[
            pl.BlockSpec((B, HW), lambda n: (n, 0)),           # x block
            pl.BlockSpec((HW, Fp), lambda n: (0, 0)),          # conv matrix (resident)
            pl.BlockSpec((1, Fp), lambda n: (0, 0)),           # conv bias row
            pl.BlockSpec((Fp, OUT_PAD), lambda n: (0, 0)),     # fc weight (resident)
            pl.BlockSpec((1, OUT_PAD), lambda n: (0, 0)),      # fc bias row
        ],
        out_specs=pl.BlockSpec((B, OUT_PAD), lambda n: (n, 0)),
    )
    out = pl.pallas_call(
        _vad_kernel,
        out_shape=jax.ShapeDtypeStruct((N_pad, OUT_PAD), jnp.float32),
        grid_spec=grid_spec,
        compiler_params=pltpu.CompilerParams(
            dimension_semantics=("parallel",)),
    )(x, wconv, b1_row, wfc, bfc_row)
    return out[:N, :2]


def reference_forward(x_nhw, params, *, stride=1, batch_norm=False, bn_params=None):
    """Pure-JAX f32 reference matching the PyTorch forward (eval-mode BN)."""
    w1_pt, b1_pt, wfc_pt, bfc_pt = params
    h = x_nhw[:, None, :, :].astype(jnp.float32)               # NCHW, C=1
    if batch_norm:
        gamma, beta, mean, var, eps = bn_params
        h = (h - mean) / jnp.sqrt(var + eps) * gamma + beta
    y = lax.conv_general_dilated(
        h, w1_pt.astype(jnp.float32), window_strides=(stride, stride),
        padding='VALID', dimension_numbers=('NCHW', 'OIHW', 'NCHW'),
        precision=lax.Precision.HIGHEST)
    y = _lrelu(y + b1_pt.reshape(1, -1, 1, 1))
    yf = y.reshape(y.shape[0], -1)                             # CHW flatten == torch .view
    return jnp.dot(yf, wfc_pt.astype(jnp.float32).T,
                   precision=lax.Precision.HIGHEST) + bfc_pt.reshape(1, 2)


if __name__ == "__main__":
    key = jax.random.PRNGKey(0)

    def make_params(k, C1, K, H, W, stride):
        H1 = (H - K) // stride + 1
        W1 = (W - K) // stride + 1
        F = C1 * H1 * W1
        ks = jax.random.split(k, 4)
        w1 = 0.1 * jax.random.normal(ks[0], (C1, 1, K, K), jnp.float32)   # OIHW
        b1 = 0.1 * jax.random.normal(ks[1], (C1,), jnp.float32)
        wfc = 0.1 * jax.random.normal(ks[2], (2, F), jnp.float32)         # CHW flatten
        bfc = 0.1 * jax.random.normal(ks[3], (2,), jnp.float32)
        return (w1, b1, wfc, bfc)

    # SmallVadModel config: conv1_features=8, conv1_size=3, stride=1,
    # batch_norm=True (eval mode), 16x16 input -> fc_size = 8*14*14 = 1568.
    N, H, W = 16, 16, 16
    C1, K, stride = 8, 3, 1
    kx, kp = jax.random.split(key)
    x = jax.random.normal(kx, (N, H, W), jnp.float32)
    params = make_params(kp, C1, K, H, W, stride)
    bn_params = (jnp.array([1.2], jnp.float32),   # gamma
                 jnp.array([0.1], jnp.float32),   # beta
                 jnp.array([0.05], jnp.float32),  # running_mean
                 jnp.array([0.9], jnp.float32),   # running_var
                 1e-5)                            # eps

    ref = reference_forward(x, params, stride=stride,
                            batch_norm=True, bn_params=bn_params)

    # 1) f32 path: tight structural check against the PyTorch semantics.
    out_f32 = small_vad_forward(x, params, conv1_size=K, stride=stride,
                                batch_norm=True, bn_params=bn_params,
                                block_b=8, compute_dtype=jnp.float32)
    jax.block_until_ready(out_f32)
    np.testing.assert_allclose(np.asarray(out_f32), np.asarray(ref),
                               rtol=1e-3, atol=1e-3)

    # 2) bf16 path (production default): x/weights in bf16, f32 accumulate.
    #    bf16-appropriate tolerances.
    out_bf16 = small_vad_forward(x, params, conv1_size=K, stride=stride,
                                 batch_norm=True, bn_params=bn_params,
                                 block_b=8)        # 2 grid steps -> both v7x TCs
    jax.block_until_ready(out_bf16)
    np.testing.assert_allclose(np.asarray(out_bf16), np.asarray(ref),
                               rtol=2e-2, atol=2e-2)

    # 3) stride=2, no batch norm: stride is absorbed into the conv matrix.
    stride2 = 2
    params2 = make_params(jax.random.fold_in(kp, 1), C1, K, H, W, stride2)
    ref2 = reference_forward(x, params2, stride=stride2)
    out2 = small_vad_forward(x, params2, conv1_size=K, stride=stride2,
                             compute_dtype=jnp.float32)
    jax.block_until_ready(out2)
    np.testing.assert_allclose(np.asarray(out2), np.asarray(ref2),
                               rtol=1e-3, atol=1e-3)

    print("KERNEL_OK")
</pallas_src>

<mosaic_0001>
module attributes {stable_mosaic.version = 11 : i64} {
  func.func @_vad_kernel(%arg0: i32, %arg1: memref<8x256xf32, #tpu.memory_space<vmem>>, %arg2: memref<256x1664xf32, #tpu.memory_space<vmem>>, %arg3: memref<1x1664xf32, #tpu.memory_space<vmem>>, %arg4: memref<1664x128xf32, #tpu.memory_space<vmem>>, %arg5: memref<1x128xf32, #tpu.memory_space<vmem>>, %arg6: memref<8x128xf32, #tpu.memory_space<vmem>>) attributes {dimension_semantics = [#tpu.dimension_semantics<parallel>], iteration_bounds = array<i64: 2>, scalar_prefetch = 0 : i64, scratch_operands = 0 : i64, tpu.core_type = #tpu.core_type<tc>, window_params = [{transform_indices = @transform_0, window_bounds = array<i64: 8, 256>}, {pipeline_mode = #tpu.pipeline_mode<synchronous>, transform_indices = @transform_1, window_bounds = array<i64: 256, 1664>}, {pipeline_mode = #tpu.pipeline_mode<synchronous>, transform_indices = @transform_2, window_bounds = array<i64: 1, 1664>}, {pipeline_mode = #tpu.pipeline_mode<synchronous>, transform_indices = @transform_3, window_bounds = array<i64: 1664, 128>}, {pipeline_mode = #tpu.pipeline_mode<synchronous>, transform_indices = @transform_4, window_bounds = array<i64: 1, 128>}, {transform_indices = @transform_5, window_bounds = array<i64: 8, 128>}]} {
    %c0 = arith.constant 0 : index
    %c0_0 = arith.constant 0 : index
    %0 = vector.load %arg1[%c0, %c0_0] : memref<8x256xf32, #tpu.memory_space<vmem>>, vector<8x256xf32>
    %c0_1 = arith.constant 0 : index
    %c0_2 = arith.constant 0 : index
    %1 = vector.load %arg2[%c0_1, %c0_2] : memref<256x1664xf32, #tpu.memory_space<vmem>>, vector<256x1664xf32>
    %cst = arith.constant dense<0.000000e+00> : vector<8x1664xf32>
    %2 = tpu.matmul %0, %1, %cst {dimension_numbers = #tpu.dot_dimension_numbers<[1], [0], [0], [1], [0, 0, 1, 1], [], []>} : vector<8x256xf32>, vector<256x1664xf32>, vector<8x1664xf32> -> vector<8x1664xf32>
    %c0_3 = arith.constant 0 : index
    %c0_4 = arith.constant 0 : index
    %3 = vector.load %arg3[%c0_3, %c0_4] : memref<1x1664xf32, #tpu.memory_space<vmem>>, vector<1x1664xf32>
    %4 = vector.broadcast %3 : vector<1x1664xf32> to vector<8x1664xf32>
    %5 = arith.addf %2, %4 : vector<8x1664xf32>
    %cst_5 = arith.constant 0.000000e+00 : f32
    %6 = vector.broadcast %cst_5 : f32 to vector<8x1664xf32>
    %7 = arith.cmpf ogt, %5, %6 : vector<8x1664xf32>
    %cst_6 = arith.constant 0.00999999977 : f32
    %8 = vector.broadcast %cst_6 : f32 to vector<8x1664xf32>
    %9 = arith.mulf %8, %5 : vector<8x1664xf32>
    %10 = arith.select %7, %5, %9 : vector<8x1664xi1>, vector<8x1664xf32>
    %c0_7 = arith.constant 0 : index
    %c0_8 = arith.constant 0 : index
    %11 = vector.load %arg4[%c0_7, %c0_8] : memref<1664x128xf32, #tpu.memory_space<vmem>>, vector<1664x128xf32>
    %cst_9 = arith.constant dense<0.000000e+00> : vector<8x128xf32>
    %12 = tpu.matmul %10, %11, %cst_9 {dimension_numbers = #tpu.dot_dimension_numbers<[1], [0], [0], [1], [0, 0, 1, 1], [], []>} : vector<8x1664xf32>, vector<1664x128xf32>, vector<8x128xf32> -> vector<8x128xf32>
    %c0_10 = arith.constant 0 : index
    %c0_11 = arith.constant 0 : index
    %13 = vector.load %arg5[%c0_10, %c0_11] : memref<1x128xf32, #tpu.memory_space<vmem>>, vector<1x128xf32>
    %14 = vector.broadcast %13 : vector<1x128xf32> to vector<8x128xf32>
    %15 = arith.addf %12, %14 : vector<8x128xf32>
    %c0_12 = arith.constant 0 : index
    %c0_13 = arith.constant 0 : index
    %16 = vector.load %arg6[%c0_12, %c0_13] : memref<8x128xf32, #tpu.memory_space<vmem>>, vector<8x128xf32>
    tpu.vector_store %arg6[%c0_12, %c0_13], %15 {strides = array<i32>} : memref<8x128xf32, #tpu.memory_space<vmem>>, vector<8x128xf32>,
    return
  }
  func.func @transform_0(%arg0: i32) -> (i32, i32) {
    %c0_i32 = arith.constant 0 : i32
    %c0_i32_0 = arith.constant 0 : i32
    return %arg0, %c0_i32 : i32, i32
  }
  func.func @transform_1(%arg0: i32) -> (i32, i32) {
    %c0_i32 = arith.constant 0 : i32
    %c0_i32_0 = arith.constant 0 : i32
    %c0_i32_1 = arith.constant 0 : i32
    return %c0_i32, %c0_i32_0 : i32, i32
  }
  func.func @transform_2(%arg0: i32) -> (i32, i32) {
    %c0_i32 = arith.constant 0 : i32
    %c0_i32_0 = arith.constant 0 : i32
    %c0_i32_1 = arith.constant 0 : i32
    return %c0_i32, %c0_i32_0 : i32, i32
  }
  func.func @transform_3(%arg0: i32) -> (i32, i32) {
    %c0_i32 = arith.constant 0 : i32
    %c0_i32_0 = arith.constant 0 : i32
    %c0_i32_1 = arith.constant 0 : i32
    return %c0_i32, %c0_i32_0 : i32, i32
  }
  func.func @transform_4(%arg0: i32) -> (i32, i32) {
    %c0_i32 = arith.constant 0 : i32
    %c0_i32_0 = arith.constant 0 : i32
    %c0_i32_1 = arith.constant 0 : i32
    return %c0_i32, %c0_i32_0 : i32, i32
  }
  func.func @transform_5(%arg0: i32) -> (i32, i32) {
    %c0_i32 = arith.constant 0 : i32
    %c0_i32_0 = arith.constant 0 : i32
    return %arg0, %c0_i32 : i32, i32
  }
}

</mosaic_0001>

<llo_original>
// kernel: tpu_custom_call.1
$region0: #{tpu_custom_call.1}
  #allocation0 [shape = 'u32[]', space=smem, size = 0x4, offset = 0x4, fixed_abs, tag = 'smem constant byte address 0x4 - core index']
  #allocation1 [shape = 'u32[144,128]{1,0:T(1,128)}', space=vmem, size = 0x12000, scoped, tag = 'internal scratch']
  %s0 = inlined_call_operand.hbm [shape: f32[16,256], index: 0, kind: input, shape index: {}]
  %s1 = inlined_call_operand.hbm [shape: f32[256,1664], index: 1, kind: input, shape index: {}]
  %s2 = inlined_call_operand.hbm [shape: f32[1,1664], index: 2, kind: input, shape index: {}]
  %s3 = inlined_call_operand.hbm [shape: f32[1664,128], index: 3, kind: input, shape index: {}]
  %s4 = inlined_call_operand.hbm [shape: f32[1,128], index: 4, kind: input, shape index: {}]
  %s5 = inlined_call_operand.hbm [shape: f32[16,128], index: 5, kind: output, shape index: {}]
  %s6 = sld [smem:[#allocation0]]
  $region73: #{tpu_custom_call.1} parent=0
    _
  %s8 = ssub.s32 1, %s6
  %s9 = scalar_select 0, %s8, %s6
  $region1: #{tpu_custom_call.1} parent=0
    #allocation2 [shape = 'u8[16384]{0}', space=vmem, size = 0x4000, scoped, tag = 'input window, operand 0']
    #allocation3 [shape = 's32[2]{0}', space=sflag, size = 0x8, scoped, tag = 'scoped memory for tpu_custom_call.1']
    #allocation4 [shape = 's32[2]{0}', space=sflag, size = 0x8, scoped, tag = 'scoped memory for tpu_custom_call.1']
    #allocation5 [shape = 'u8[1703936]{0}', space=vmem, size = 0x1a0000, scoped, tag = 'input window, operand 1, single buffered']
    #allocation6 [shape = 's32[1]{0}', space=sflag, size = 0x4, scoped, tag = 'scoped memory for tpu_custom_call.1']
    #allocation7 [shape = 'u8[6656]{0}', space=vmem, size = 0x1c00, scoped, tag = 'input window, operand 2, single buffered']
    #allocation8 [shape = 'u8[851968]{0}', space=vmem, size = 0xd0000, scoped, tag = 'input window, operand 3, single buffered']
    #allocation9 [shape = 's32[1]{0}', space=sflag, size = 0x4, scoped, tag = 'scoped memory for tpu_custom_call.1']
    #allocation10 [shape = 'u8[512]{0}', space=vmem, size = 0x400, scoped, tag = 'input window, operand 4, single buffered']
    #allocation11 [shape = 'u8[8192]{0}', space=vmem, size = 0x2000, scoped, tag = 'output window, operand 0']
    %10 = vsyncpa [#allocation3], 0
    %s11 = scalar_lea.sflag [#allocation3], 1
    %12 = vsyncpa %s11, 0
    %13 = vsyncpa [#allocation6], 0
    %14 = vsyncpa [#allocation9], 0
    %15 = vsyncpa [#allocation4], 0
    %s16 = scalar_lea.sflag [#allocation4], 1
    %17 = vsyncpa %s16, 0
    loop: start=0, step=1, limit=4
    $region2: #{tpu_custom_call.1} parent=1 // loop_pre_header
      _
    $region3: #{tpu_custom_call.1} parent=1 // loop_header
      %s19 = sphi 0, %s23
      %p20 = scmp.ge.s32.totalorder %s19, 4
      %s29 = sphi 0, %s31
      %s32 = sphi 0, %s29
      %s33 = sphi 0, %s32
      %s49 = sphi 0, %s33
      %s53 = sphi 0, %s53
      %s55 = sphi 0, %s53
      %s56 = sphi 0, %s55
      %s70 = sphi 0, %s56
      %s74 = sphi 0, %s74
      %s76 = sphi 0, %s74
      %s77 = sphi 0, %s76
      %s91 = sphi 0, %s77
      %s95 = sphi 0, %s95
      %s97 = sphi 0, %s95
      %s98 = sphi 0, %s97
      %s112 = sphi 0, %s98
      %s116 = sphi 0, %s116
      %s118 = sphi 0, %s116
      %s119 = sphi 0, %s118
      %s133 = sphi 0, %s119
      %s139 = sphi 0, %s141
      %s142 = sphi 0, %s139
      %s143 = sphi 0, %s142
      %s159 = sphi 0, %s143
    $region4: #{tpu_custom_call.1} parent=1 // loop_header_branch
      %22 = sbr.rel (%p20) target = $region8
    $region5: #{tpu_custom_call.1} parent=1 // loop_body
      %s24 = ssub.s32 %s19, 1
      %s25 = ssub.s32 %s19, 2
      %s26 = sadd.s32 %s19, 1
      %s27 = ssub.s32 %s19, %s26
      %p28 = scmp.eq.s32.totalorder %s27, 0
      %s30 = sadd.s32 %s29, 1
      %s31 = scalar_select %p28, %s29, %s30
      %p34 = pneg %p28
      %p35 = scmp.eq.s32.totalorder %s19, 1
      %p36 = por %p34, %p35
      %p37 = scmp.ne.s32.totalorder %s29, %s32
      %p38 = scmp.eq.s32.totalorder %s19, 0
      %p39 = por %p37, %p38
      %p40 = scmp.ne.s32.totalorder %s29, %s32
      %p41 = scmp.eq.s32.totalorder %s24, 1
      %p42 = por %p40, %p41
      %p43 = scmp.ne.s32.totalorder %s32, %s33
      %p44 = scmp.eq.s32.totalorder %s24, 0
      %p45 = por %p43, %p44
      %p46 = scmp.ne.s32.totalorder %s32, %s33
      %p47 = scmp.eq.s32.totalorder %s25, 1
      %p48 = por %p46, %p47
      %p50 = scmp.ne.s32.totalorder %s33, %s49
      %p51 = scmp.eq.s32.totalorder %s25, 0
      %p52 = por %p50, %p51
      %s54 = sadd.s32 %s53, 1
      %p57 = scmp.eq.s32.totalorder %s19, 1
      %p58 = scmp.ne.s32.totalorder %s53, %s55
      %p59 = scmp.eq.s32.totalorder %s19, 0
      %p60 = por %p58, %p59
      %p61 = scmp.ne.s32.totalorder %s53, %s55
      %p62 = scmp.eq.s32.totalorder %s24, 1
      %p63 = por %p61, %p62
      %p64 = scmp.ne.s32.totalorder %s55, %s56
      %p65 = scmp.eq.s32.totalorder %s24, 0
      %p66 = por %p64, %p65
      %p67 = scmp.ne.s32.totalorder %s55, %s56
      %p68 = scmp.eq.s32.totalorder %s25, 1
      %p69 = por %p67, %p68
      %p71 = scmp.ne.s32.totalorder %s56, %s70
      %p72 = scmp.eq.s32.totalorder %s25, 0
      %p73 = por %p71, %p72
      %s75 = sadd.s32 %s74, 1
      %p78 = scmp.eq.s32.totalorder %s19, 1
      %p79 = scmp.ne.s32.totalorder %s74, %s76
      %p80 = scmp.eq.s32.totalorder %s19, 0
      %p81 = por %p79, %p80
      %p82 = scmp.ne.s32.totalorder %s74, %s76
      %p83 = scmp.eq.s32.totalorder %s24, 1
      %p84 = por %p82, %p83
      %p85 = scmp.ne.s32.totalorder %s76, %s77
      %p86 = scmp.eq.s32.totalorder %s24, 0
      %p87 = por %p85, %p86
      %p88 = scmp.ne.s32.totalorder %s76, %s77
      %p89 = scmp.eq.s32.totalorder %s25, 1
      %p90 = por %p88, %p89
      %p92 = scmp.ne.s32.totalorder %s77, %s91
      %p93 = scmp.eq.s32.totalorder %s25, 0
      %p94 = por %p92, %p93
      %s96 = sadd.s32 %s95, 1
      %p99 = scmp.eq.s32.totalorder %s19, 1
      %p100 = scmp.ne.s32.totalorder %s95, %s97
      %p101 = scmp.eq.s32.totalorder %s19, 0
      %p102 = por %p100, %p101
      %p103 = scmp.ne.s32.totalorder %s95, %s97
      %p104 = scmp.eq.s32.totalorder %s24, 1
      %p105 = por %p103, %p104
      %p106 = scmp.ne.s32.totalorder %s97, %s98
      %p107 = scmp.eq.s32.totalorder %s24, 0
      %p108 = por %p106, %p107
      %p109 = scmp.ne.s32.totalorder %s97, %s98
      %p110 = scmp.eq.s32.totalorder %s25, 1
      %p111 = por %p109, %p110
      %p113 = scmp.ne.s32.totalorder %s98, %s112
      %p114 = scmp.eq.s32.totalorder %s25, 0
      %p115 = por %p113, %p114
      %s117 = sadd.s32 %s116, 1
      %p120 = scmp.eq.s32.totalorder %s19, 1
      %p121 = scmp.ne.s32.totalorder %s116, %s118
      %p122 = scmp.eq.s32.totalorder %s19, 0
      %p123 = por %p121, %p122
      %p124 = scmp.ne.s32.totalorder %s116, %s118
      %p125 = scmp.eq.s32.totalorder %s24, 1
      %p126 = por %p124, %p125
      %p127 = scmp.ne.s32.totalorder %s118, %s119
      %p128 = scmp.eq.s32.totalorder %s24, 0
      %p129 = por %p127, %p128
      %p130 = scmp.ne.s32.totalorder %s118, %s119
      %p131 = scmp.eq.s32.totalorder %s25, 1
      %p132 = por %p130, %p131
      %p134 = scmp.ne.s32.totalorder %s119, %s133
      %p135 = scmp.eq.s32.totalorder %s25, 0
      %p136 = por %p134, %p135
      %s137 = ssub.s32 %s19, %s26
      %p138 = scmp.eq.s32.totalorder %s137, 0
      %s140 = sadd.s32 %s139, 1
      %s141 = scalar_select %p138, %s139, %s140
      %p144 = pneg %p138
      %p145 = scmp.eq.s32.totalorder %s19, 1
      %p146 = por %p144, %p145
      %p147 = scmp.ne.s32.totalorder %s139, %s142
      %p148 = scmp.eq.s32.totalorder %s19, 0
      %p149 = por %p147, %p148
      %p150 = scmp.ne.s32.totalorder %s139, %s142
      %p151 = scmp.eq.s32.totalorder %s24, 1
      %p152 = por %p150, %p151
      %p153 = scmp.ne.s32.totalorder %s142, %s143
      %p154 = scmp.eq.s32.totalorder %s24, 0
      %p155 = por %p153, %p154
      %p156 = scmp.ne.s32.totalorder %s142, %s143
      %p157 = scmp.eq.s32.totalorder %s25, 1
      %p158 = por %p156, %p157
      %p160 = scmp.ne.s32.totalorder %s143, %s159
      %p161 = scmp.eq.s32.totalorder %s25, 0
      %p162 = por %p160, %p161
      %p163 = scmp.le.s32.totalorder 1, %s19
      %p164 = scmp.lt.s32.totalorder %s19, 3
      %p165 = pnand %p163, %p164
      %p166 = pneg %p165
      // Predicated region
      $region9: #{tpu_custom_call.1} parent=5 // pred_check
        _
      $region10: #{tpu_custom_call.1} parent=5 // pred_check_branch
        %168 = sbr.rel (%p165) target = $region12
      $region11: #{tpu_custom_call.1} parent=5 // pred_region
        %s169 = ssub.s32 %s19, 1
        // Predicated region
        $region13: #{tpu_custom_call.1} parent=11 // pred_check
          %p170 = pneg %p66
        $region14: #{tpu_custom_call.1} parent=11 // pred_check_branch
          %172 = sbr.rel (%p170) target = $region16
        $region15: #{tpu_custom_call.1} parent=11 // pred_region
          %s174 = ssub.s32 53248, 53248
          %175 = vsyncadd [#allocation6], %s174
          %s176 = sshll.u32 [#allocation5], 4
          %s177 = int_to_ptr.vmem [resolvable:$true] %s176
          %182 = dma.hbm_to_vmem [thread:$0]  %s1, 53248, %s177, [#allocation6], 1664, 1664, 104
        $region16: #{tpu_custom_call.1} parent=11 // pred_fallthru
          _
        // Predicated region
        $region17: #{tpu_custom_call.1} parent=11 // pred_check
          %p183 = pneg %p87
        $region18: #{tpu_custom_call.1} parent=11 // pred_check_branch
          %185 = sbr.rel (%p183) target = $region20
        $region19: #{tpu_custom_call.1} parent=11 // pred_region
          %s187 = ssub.s32 208, 208
          %188 = vsyncadd [#allocation6], %s187
          %s190 = sshll.u32 [#allocation7], 4
          %s191 = int_to_ptr.vmem [resolvable:$true] %s190
          %193 = dma.hbm_to_vmem [thread:$0]  %s2, 208, %s191, [#allocation6]
        $region20: #{tpu_custom_call.1} parent=11 // pred_fallthru
          _
        // Predicated region
        $region21: #{tpu_custom_call.1} parent=11 // pred_check
          %p194 = pneg %p108
        $region22: #{tpu_custom_call.1} parent=11 // pred_check_branch
          %196 = sbr.rel (%p194) target = $region24
        $region23: #{tpu_custom_call.1} parent=11 // pred_region
          %s198 = ssub.s32 26624, 26624
          %199 = vsyncadd [#allocation9], %s198
          %s200 = sshll.u32 [#allocation8], 4
          %s201 = int_to_ptr.vmem [resolvable:$true] %s200
          %206 = dma.hbm_to_vmem [thread:$0]  %s3, 26624, %s201, [#allocation9], 128, 128, 8
        $region24: #{tpu_custom_call.1} parent=11 // pred_fallthru
          _
        // Predicated region
        $region25: #{tpu_custom_call.1} parent=11 // pred_check
          %p207 = pneg %p129
        $region26: #{tpu_custom_call.1} parent=11 // pred_check_branch
          %209 = sbr.rel (%p207) target = $region28
        $region27: #{tpu_custom_call.1} parent=11 // pred_region
          %s211 = ssub.s32 16, 16
          %212 = vsyncadd [#allocation9], %s211
          %s214 = sshll.u32 [#allocation10], 4
          %s215 = int_to_ptr.vmem [resolvable:$true] %s214
          %217 = dma.hbm_to_vmem [thread:$0]  %s4, 16, %s215, [#allocation9]
        $region28: #{tpu_custom_call.1} parent=11 // pred_fallthru
          _
      $region12: #{tpu_custom_call.1} parent=5 // pred_fallthru
        _
      %p218 = scmp.lt.s32.totalorder %s19, 2
      // Predicated region
      $region29: #{tpu_custom_call.1} parent=5 // pred_check
        %p219 = pneg %p218
      $region30: #{tpu_custom_call.1} parent=5 // pred_check_branch
        %221 = sbr.rel (%p219) target = $region32
      $region31: #{tpu_custom_call.1} parent=5 // pred_region
        // Predicated region
        $region33: #{tpu_custom_call.1} parent=31 // pred_check
          %p222 = pneg %p39
        $region34: #{tpu_custom_call.1} parent=31 // pred_check_branch
          %224 = sbr.rel (%p222) target = $region36
        $region35: #{tpu_custom_call.1} parent=31 // pred_region
          %s225 = sand.u32 %s29, 1
          %s226 = scalar_lea.sflag [#allocation3], %s225
          %s227 = sand.u32 %s29, 1
          %s228 = smul.addr %s227, 16
          %s229 = scalar_lea.vmem [#allocation2], %s228
          %s231 = ssub.s32 256, 256
          %232 = vsyncadd %s226, %s231
          %s233 = smul.addr %s19, 2
          %s234 = smul.addr %s233, 128
          %s235 = scalar_lea.hbm %s0, %s234
          %s237 = sshll.u32 %s229, 4
          %s238 = int_to_ptr.vmem [resolvable:$true] %s237
          %240 = dma.hbm_to_vmem [thread:$0]  %s235, 256, %s238, %s226
        $region36: #{tpu_custom_call.1} parent=31 // pred_fallthru
          _
      $region32: #{tpu_custom_call.1} parent=5 // pred_fallthru
        _
      %p241 = scmp.le.s32.totalorder 1, %s19
      %p242 = scmp.lt.s32.totalorder %s19, 3
      %p243 = pnand %p241, %p242
      %p244 = pneg %p243
      // Predicated region
      $region37: #{tpu_custom_call.1} parent=5 // pred_check
        _
      $region38: #{tpu_custom_call.1} parent=5 // pred_check_branch
        %246 = sbr.rel (%p243) target = $region40
      $region39: #{tpu_custom_call.1} parent=5 // pred_region
        %s247 = ssub.s32 %s19, 1
        %s248 = sand.u32 %s32, 1
        %s249 = scalar_lea.sflag [#allocation3], %s248
        %s250 = sand.u32 %s32, 1
        %s251 = smul.addr %s250, 16
        %s252 = scalar_lea.vmem [#allocation2], %s251
        // Predicated region
        $region41: #{tpu_custom_call.1} parent=39 // pred_check
          %p253 = pneg %p45
        $region42: #{tpu_custom_call.1} parent=39 // pred_check_branch
          %255 = sbr.rel (%p253) target = $region44
        $region43: #{tpu_custom_call.1} parent=39 // pred_region
          %256 = dma.done %s249, 256
        $region44: #{tpu_custom_call.1} parent=39 // pred_fallthru
          _
        // Predicated region
        $region45: #{tpu_custom_call.1} parent=39 // pred_check
          %p257 = pneg %p66
        $region46: #{tpu_custom_call.1} parent=39 // pred_check_branch
          %259 = sbr.rel (%p257) target = $region48
        $region47: #{tpu_custom_call.1} parent=39 // pred_region
          %260 = dma.done [#allocation6], 53248
        $region48: #{tpu_custom_call.1} parent=39 // pred_fallthru
          _
        // Predicated region
        $region49: #{tpu_custom_call.1} parent=39 // pred_check
          %p261 = pneg %p87
        $region50: #{tpu_custom_call.1} parent=39 // pred_check_branch
          %263 = sbr.rel (%p261) target = $region52
        $region51: #{tpu_custom_call.1} parent=39 // pred_region
          %264 = dma.done [#allocation6], 208
        $region52: #{tpu_custom_call.1} parent=39 // pred_fallthru
          _
        // Predicated region
        $region53: #{tpu_custom_call.1} parent=39 // pred_check
          %p265 = pneg %p108
        $region54: #{tpu_custom_call.1} parent=39 // pred_check_branch
          %267 = sbr.rel (%p265) target = $region56
        $region55: #{tpu_custom_call.1} parent=39 // pred_region
          %268 = dma.done [#allocation9], 26624
        $region56: #{tpu_custom_call.1} parent=39 // pred_fallthru
          _
        // Predicated region
        $region57: #{tpu_custom_call.1} parent=39 // pred_check
          %p269 = pneg %p129
        $region58: #{tpu_custom_call.1} parent=39 // pred_check_branch
          %271 = sbr.rel (%p269) target = $region60
        $region59: #{tpu_custom_call.1} parent=39 // pred_region
          %272 = dma.done [#allocation9], 16
        $region60: #{tpu_custom_call.1} parent=39 // pred_fallthru
          _
        %s273 = sand.u32 %s32, 1
        %s274 = scalar_lea.sflag [#allocation3], %s273
        %s275 = sand.u32 %s32, 1
        %s276 = smul.addr %s275, 16
        %s277 = scalar_lea.vmem [#allocation2], %s276
        %p278 = pneg %p45
        %p279 = pneg %p42
        %p280 = pneg %p66
        %p281 = pneg %p63
        %p282 = pneg %p87
        %p283 = pneg %p84
        %p284 = pneg %p108
        %p285 = pneg %p105
        %p286 = pneg %p129
        %p287 = pneg %p126
        %p288 = pneg %p155
        %p289 = pneg %p152
        %s290 = sand.u32 %s142, 1
        %s291 = scalar_lea.sflag [#allocation4], %s290
        %s292 = sand.u32 %s142, 1
        %s293 = smul.addr %s292, 8
        %s294 = scalar_lea.vmem [#allocation11], %s293
        %v295 = vld [vmem:[%s252] sm:$0xff]
        %v296 = vld [vmem:[%s252 + $0x8] sm:$0xff]
        %v297 = vld [vmem:[#allocation5] sm:$0xff]
        %v298 = vld [vmem:[#allocation5 + $0x8] sm:$0xff]
        %v299 = vld [vmem:[#allocation5 + $0x10] sm:$0xff]
        %v300 = vld [vmem:[#allocation5 + $0x18] sm:$0xff]
        %v301 = vld [vmem:[#allocation5 + $0x20] sm:$0xff]
        %v302 = vld [vmem:[#allocation5 + $0x28] sm:$0xff]
        %v303 = vld [vmem:[#allocation5 + $0x30] sm:$0xff]
        %v304 = vld [vmem:[#allocation5 + $0x38] sm:$0xff]
        %v305 = vld [vmem:[#allocation5 + $0x40] sm:$0xff]
        %v306 = vld [vmem:[#allocation5 + $0x48] sm:$0xff]
        %v307 = vld [vmem:[#allocation5 + $0x50] sm:$0xff]
        %v308 = vld [vmem:[#allocation5 + $0x58] sm:$0xff]
        %v309 = vld [vmem:[#allocation5 + $0x60] sm:$0xff]
        %v310 = vld [vmem:[#allocation5 + $0x68] sm:$0xff]
        %v311 = vld [vmem:[#allocation5 + $0x70] sm:$0xff]
        %v312 = vld [vmem:[#allocation5 + $0x78] sm:$0xff]
        %v313 = vld [vmem:[#allocation5 + $0x80] sm:$0xff]
        %v314 = vld [vmem:[#allocation5 + $0x88] sm:$0xff]
        %v315 = vld [vmem:[#allocation5 + $0x90] sm:$0xff]
        %v316 = vld [vmem:[#allocation5 + $0x98] sm:$0xff]
        %v317 = vld [vmem:[#allocation5 + $0xa0] sm:$0xff]
        %v318 = vld [vmem:[#allocation5 + $0xa8] sm:$0xff]
        %v319 = vld [vmem:[#allocation5 + $0xb0] sm:$0xff]
        %v320 = vld [vmem:[#allocation5 + $0xb8] sm:$0xff]
        %v321 = vld [vmem:[#allocation5 + $0xc0] sm:$0xff]
        %v322 = vld [vmem:[#allocation5 + $0xc8] sm:$0xff]
        %v323 = vld [vmem:[#allocation5 + $0xd0] sm:$0xff]
        %v324 = vld [vmem:[#allocation5 + $0xd8] sm:$0xff]
        %v325 = vld [vmem:[#allocation5 + $0xe0] sm:$0xff]
        %v326 = vld [vmem:[#allocation5 + $0xe8] sm:$0xff]
        %v327 = vld [vmem:[#allocation5 + $0xf0] sm:$0xff]
        %v328 = vld [vmem:[#allocation5 + $0xf8] sm:$0xff]
        %v329 = vld [vmem:[#allocation5 + $0x100] sm:$0xff]
        %v330 = vld [vmem:[#allocation5 + $0x108] sm:$0xff]
        %v331 = vld [vmem:[#allocation5 + $0x110] sm:$0xff]
        %v332 = vld [vmem:[#allocation5 + $0x118] sm:$0xff]
        %v333 = vld [vmem:[#allocation5 + $0x120] sm:$0xff]
        %v334 = vld [vmem:[#allocation5 + $0x128] sm:$0xff]
        %v335 = vld [vmem:[#allocation5 + $0x130] sm:$0xff]
        %v336 = vld [vmem:[#allocation5 + $0x138] sm:$0xff]
        %v337 = vld [vmem:[#allocation5 + $0x140] sm:$0xff]
        %v338 = vld [vmem:[#allocation5 + $0x148] sm:$0xff]
        %v339 = vld [vmem:[#allocation5 + $0x150] sm:$0xff]
        %v340 = vld [vmem:[#allocation5 + $0x158] sm:$0xff]
        %v341 = vld [vmem:[#allocation5 + $0x160] sm:$0xff]
        %v342 = vld [vmem:[#allocation5 + $0x168] sm:$0xff]
        %v343 = vld [vmem:[#allocation5 + $0x170] sm:$0xff]
        %v344 = vld [vmem:[#allocation5 + $0x178] sm:$0xff]
        %v345 = vld [vmem:[#allocation5 + $0x180] sm:$0xff]
        %v346 = vld [vmem:[#allocation5 + $0x188] sm:$0xff]
        %v347 = vld [vmem:[#allocation5 + $0x190] sm:$0xff]
        %v348 = vld [vmem:[#allocation5 + $0x198] sm:$0xff]
        %v349 = vld [vmem:[#allocation5 + $0x1a0] sm:$0xff]
        %v350 = vld [vmem:[#allocation5 + $0x1a8] sm:$0xff]
        %v351 = vld [vmem:[#allocation5 + $0x1b0] sm:$0xff]
        %v352 = vld [vmem:[#allocation5 + $0x1b8] sm:$0xff]
        %v353 = vld [vmem:[#allocation5 + $0x1c0] sm:$0xff]
        %v354 = vld [vmem:[#allocation5 + $0x1c8] sm:$0xff]
        %v355 = vld [vmem:[#allocation5 + $0x1d0] sm:$0xff]
        %v356 = vld [vmem:[#allocation5 + $0x1d8] sm:$0xff]
        %v357 = vld [vmem:[#allocation5 + $0x1e0] sm:$0xff]
        %v358 = vld [vmem:[#allocation5 + $0x1e8] sm:$0xff]
        %v359 = vld [vmem:[#allocation5 + $0x1f0] sm:$0xff]
        %v360 = vld [vmem:[#allocation5 + $0x1f8] sm:$0xff]
        %v361 = vld [vmem:[#allocation5 + $0x200] sm:$0xff]
        %v362 = vld [vmem:[#allocation5 + $0x208] sm:$0xff]
        %v363 = vld [vmem:[#allocation5 + $0x210] sm:$0xff]
        %v364 = vld [vmem:[#allocation5 + $0x218] sm:$0xff]
        %v365 = vld [vmem:[#allocation5 + $0x220] sm:$0xff]
        %v366 = vld [vmem:[#allocation5 + $0x228] sm:$0xff]
        %v367 = vld [vmem:[#allocation5 + $0x230] sm:$0xff]
        %v368 = vld [vmem:[#allocation5 + $0x238] sm:$0xff]
        %v369 = vld [vmem:[#allocation5 + $0x240] sm:$0xff]
        %v370 = vld [vmem:[#allocation5 + $0x248] sm:$0xff]
        %v371 = vld [vmem:[#allocation5 + $0x250] sm:$0xff]
        %v372 = vld [vmem:[#allocation5 + $0x258] sm:$0xff]
        %v373 = vld [vmem:[#allocation5 + $0x260] sm:$0xff]
        %v374 = vld [vmem:[#allocation5 + $0x268] sm:$0xff]
        %v375 = vld [vmem:[#allocation5 + $0x270] sm:$0xff]
        %v376 = vld [vmem:[#allocation5 + $0x278] sm:$0xff]
        %v377 = vld [vmem:[#allocation5 + $0x280] sm:$0xff]
        %v378 = vld [vmem:[#allocation5 + $0x288] sm:$0xff]
        %v379 = vld [vmem:[#allocation5 + $0x290] sm:$0xff]
        %v380 = vld [vmem:[#allocation5 + $0x298] sm:$0xff]
        %v381 = vld [vmem:[#allocation5 + $0x2a0] sm:$0xff]
        %v382 = vld [vmem:[#allocation5 + $0x2a8] sm:$0xff]
        %v383 = vld [vmem:[#allocation5 + $0x2b0] sm:$0xff]
        %v384 = vld [vmem:[#allocation5 + $0x2b8] sm:$0xff]
        %v385 = vld [vmem:[#allocation5 + $0x2c0] sm:$0xff]
        %v386 = vld [vmem:[#allocation5 + $0x2c8] sm:$0xff]
        %v387 = vld [vmem:[#allocation5 + $0x2d0] sm:$0xff]
        %v388 = vld [vmem:[#allocation5 + $0x2d8] sm:$0xff]
        %v389 = vld [vmem:[#allocation5 + $0x2e0] sm:$0xff]
        %v390 = vld [vmem:[#allocation5 + $0x2e8] sm:$0xff]
        %v391 = vld [vmem:[#allocation5 + $0x2f0] sm:$0xff]
        %v392 = vld [vmem:[#allocation5 + $0x2f8] sm:$0xff]
        %v393 = vld [vmem:[#allocation5 + $0x300] sm:$0xff]
        %v394 = vld [vmem:[#allocation5 + $0x308] sm:$0xff]
        %v395 = vld [vmem:[#allocation5 + $0x310] sm:$0xff]
        %v396 = vld [vmem:[#allocation5 + $0x318] sm:$0xff]
        %v397 = vld [vmem:[#allocation5 + $0x320] sm:$0xff]
        %v398 = vld [vmem:[#allocation5 + $0x328] sm:$0xff]
        %v399 = vld [vmem:[#allocation5 + $0x330] sm:$0xff]
        %v400 = vld [vmem:[#allocation5 + $0x338] sm:$0xff]
        %v401 = vld [vmem:[#allocation5 + $0x340] sm:$0xff]
        %v402 = vld [vmem:[#allocation5 + $0x348] sm:$0xff]
        %v403 = vld [vmem:[#allocation5 + $0x350] sm:$0xff]
        %v404 = vld [vmem:[#allocation5 + $0x358] sm:$0xff]
        %v405 = vld [vmem:[#allocation5 + $0x360] sm:$0xff]
        %v406 = vld [vmem:[#allocation5 + $0x368] sm:$0xff]
        %v407 = vld [vmem:[#allocation5 + $0x370] sm:$0xff]
        %v408 = vld [vmem:[#allocation5 + $0x378] sm:$0xff]
        %v409 = vld [vmem:[#allocation5 + $0x380] sm:$0xff]
        %v410 = vld [vmem:[#allocation5 + $0x388] sm:$0xff]
        %v411 = vld [vmem:[#allocation5 + $0x390] sm:$0xff]
        %v412 = vld [vmem:[#allocation5 + $0x398] sm:$0xff]
        %v413 = vld [vmem:[#allocation5 + $0x3a0] sm:$0xff]
        %v414 = vld [vmem:[#allocation5 + $0x3a8] sm:$0xff]
        %v415 = vld [vmem:[#allocation5 + $0x3b0] sm:$0xff]
        %v416 = vld [vmem:[#allocation5 + $0x3b8] sm:$0xff]
        %v417 = vld [vmem:[#allocation5 + $0x3c0] sm:$0xff]
        %v418 = vld [vmem:[#allocation5 + $0x3c8] sm:$0xff]
        %v419 = vld [vmem:[#allocation5 + $0x3d0] sm:$0xff]
        %v420 = vld [vmem:[#allocation5 + $0x3d8] sm:$0xff]
        %v421 = vld [vmem:[#allocation5 + $0x3e0] sm:$0xff]
        %v422 = vld [vmem:[#allocation5 + $0x3e8] sm:$0xff]
        %v423 = vld [vmem:[#allocation5 + $0x3f0] sm:$0xff]
        %v424 = vld [vmem:[#allocation5 + $0x3f8] sm:$0xff]
        %v425 = vld [vmem:[#allocation5 + $0x400] sm:$0xff]
        %v426 = vld [vmem:[#allocation5 + $0x408] sm:$0xff]
        %v427 = vld [vmem:[#allocation5 + $0x410] sm:$0xff]
        %v428 = vld [vmem:[#allocation5 + $0x418] sm:$0xff]
        %v429 = vld [vmem:[#allocation5 + $0x420] sm:$0xff]
        %v430 = vld [vmem:[#allocation5 + $0x428] sm:$0xff]
        %v431 = vld [vmem:[#allocation5 + $0x430] sm:$0xff]
        %v432 = vld [vmem:[#allocation5 + $0x438] sm:$0xff]
        %v433 = vld [vmem:[#allocation5 + $0x440] sm:$0xff]
        %v434 = vld [vmem:[#allocation5 + $0x448] sm:$0xff]
        %v435 = vld [vmem:[#allocation5 + $0x450] sm:$0xff]
        %v436 = vld [vmem:[#allocation5 + $0x458] sm:$0xff]
        %v437 = vld [vmem:[#allocation5 + $0x460] sm:$0xff]
        %v438 = vld [vmem:[#allocation5 + $0x468] sm:$0xff]
        %v439 = vld [vmem:[#allocation5 + $0x470] sm:$0xff]
        %v440 = vld [vmem:[#allocation5 + $0x478] sm:$0xff]
        %v441 = vld [vmem:[#allocation5 + $0x480] sm:$0xff]
        %v442 = vld [vmem:[#allocation5 + $0x488] sm:$0xff]
        %v443 = vld [vmem:[#allocation5 + $0x490] sm:$0xff]
        %v444 = vld [vmem:[#allocation5 + $0x498] sm:$0xff]
        %v445 = vld [vmem:[#allocation5 + $0x4a0] sm:$0xff]
        %v446 = vld [vmem:[#allocation5 + $0x4a8] sm:$0xff]
        %v447 = vld [vmem:[#allocation5 + $0x4b0] sm:$0xff]
        %v448 = vld [vmem:[#allocation5 + $0x4b8] sm:$0xff]
        %v449 = vld [vmem:[#allocation5 + $0x4c0] sm:$0xff]
        %v450 = vld [vmem:[#allocation5 + $0x4c8] sm:$0xff]
        %v451 = vld [vmem:[#allocation5 + $0x4d0] sm:$0xff]
        %v452 = vld [vmem:[#allocation5 + $0x4d8] sm:$0xff]
        %v453 = vld [vmem:[#allocation5 + $0x4e0] sm:$0xff]
        %v454 = vld [vmem:[#allocation5 + $0x4e8] sm:$0xff]
        %v455 = vld [vmem:[#allocation5 + $0x4f0] sm:$0xff]
        %v456 = vld [vmem:[#allocation5 + $0x4f8] sm:$0xff]
        %v457 = vld [vmem:[#allocation5 + $0x500] sm:$0xff]
        %v458 = vld [vmem:[#allocation5 + $0x508] sm:$0xff]
        %v459 = vld [vmem:[#allocation5 + $0x510] sm:$0xff]
        %v460 = vld [vmem:[#allocation5 + $0x518] sm:$0xff]
        %v461 = vld [vmem:[#allocation5 + $0x520] sm:$0xff]
        %v462 = vld [vmem:[#allocation5 + $0x528] sm:$0xff]
        %v463 = vld [vmem:[#allocation5 + $0x530] sm:$0xff]
        %v464 = vld [vmem:[#allocation5 + $0x538] sm:$0xff]
        %v465 = vld [vmem:[#allocation5 + $0x540] sm:$0xff]
        %v466 = vld [vmem:[#allocation5 + $0x548] sm:$0xff]
        %v467 = vld [vmem:[#allocation5 + $0x550] sm:$0xff]
        %v468 = vld [vmem:[#allocation5 + $0x558] sm:$0xff]
        %v469 = vld [vmem:[#allocation5 + $0x560] sm:$0xff]
        %v470 = vld [vmem:[#allocation5 + $0x568] sm:$0xff]
        %v471 = vld [vmem:[#allocation5 + $0x570] sm:$0xff]
        %v472 = vld [vmem:[#allocation5 + $0x578] sm:$0xff]
        %v473 = vld [vmem:[#allocation5 + $0x580] sm:$0xff]
        %v474 = vld [vmem:[#allocation5 + $0x588] sm:$0xff]
        %v475 = vld [vmem:[#allocation5 + $0x590] sm:$0xff]
        %v476 = vld [vmem:[#allocation5 + $0x598] sm:$0xff]
        %v477 = vld [vmem:[#allocation5 + $0x5a0] sm:$0xff]
        %v478 = vld [vmem:[#allocation5 + $0x5a8] sm:$0xff]
        %v479 = vld [vmem:[#allocation5 + $0x5b0] sm:$0xff]
        %v480 = vld [vmem:[#allocation5 + $0x5b8] sm:$0xff]
        %v481 = vld [vmem:[#allocation5 + $0x5c0] sm:$0xff]
        %v482 = vld [vmem:[#allocation5 + $0x5c8] sm:$0xff]
        %v483 = vld [vmem:[#allocation5 + $0x5d0] sm:$0xff]
        %v484 = vld [vmem:[#allocation5 + $0x5d8] sm:$0xff]
        %v485 = vld [vmem:[#allocation5 + $0x5e0] sm:$0xff]
        %v486 = vld [vmem:[#allocation5 + $0x5e8] sm:$0xff]
        %v487 = vld [vmem:[#allocation5 + $0x5f0] sm:$0xff]
        %v488 = vld [vmem:[#allocation5 + $0x5f8] sm:$0xff]
        %v489 = vld [vmem:[#allocation5 + $0x600] sm:$0xff]
        %v490 = vld [vmem:[#allocation5 + $0x608] sm:$0xff]
        %v491 = vld [vmem:[#allocation5 + $0x610] sm:$0xff]
        %v492 = vld [vmem:[#allocation5 + $0x618] sm:$0xff]
        %v493 = vld [vmem:[#allocation5 + $0x620] sm:$0xff]
        %v494 = vld [vmem:[#allocation5 + $0x628] sm:$0xff]
        %v495 = vld [vmem:[#allocation5 + $0x630] sm:$0xff]
        %v496 = vld [vmem:[#allocation5 + $0x638] sm:$0xff]
        %v497 = vld [vmem:[#allocation5 + $0x640] sm:$0xff]
        %v498 = vld [vmem:[#allocation5 + $0x648] sm:$0xff]
        %v499 = vld [vmem:[#allocation5 + $0x650] sm:$0xff]
        %v500 = vld [vmem:[#allocation5 + $0x658] sm:$0xff]
        %v501 = vld [vmem:[#allocation5 + $0x660] sm:$0xff]
        %v502 = vld [vmem:[#allocation5 + $0x668] sm:$0xff]
        %v503 = vld [vmem:[#allocation5 + $0x670] sm:$0xff]
        %v504 = vld [vmem:[#allocation5 + $0x678] sm:$0xff]
        %v505 = vld [vmem:[#allocation5 + $0x680] sm:$0xff]
        %v506 = vld [vmem:[#allocation5 + $0x688] sm:$0xff]
        %v507 = vld [vmem:[#allocation5 + $0x690] sm:$0xff]
        %v508 = vld [vmem:[#allocation5 + $0x698] sm:$0xff]
        %v509 = vld [vmem:[#allocation5 + $0x6a0] sm:$0xff]
        %v510 = vld [vmem:[#allocation5 + $0x6a8] sm:$0xff]
        %v511 = vld [vmem:[#allocation5 + $0x6b0] sm:$0xff]
        %v512 = vld [vmem:[#allocation5 + $0x6b8] sm:$0xff]
        %v513 = vld [vmem:[#allocation5 + $0x6c0] sm:$0xff]
        %v514 = vld [vmem:[#allocation5 + $0x6c8] sm:$0xff]
        %v515 = vld [vmem:[#allocation5 + $0x6d0] sm:$0xff]
        %v516 = vld [vmem:[#allocation5 + $0x6d8] sm:$0xff]
        %v517 = vld [vmem:[#allocation5 + $0x6e0] sm:$0xff]
        %v518 = vld [vmem:[#allocation5 + $0x6e8] sm:$0xff]
        %v519 = vld [vmem:[#allocation5 + $0x6f0] sm:$0xff]
        %v520 = vld [vmem:[#allocation5 + $0x6f8] sm:$0xff]
        %v521 = vld [vmem:[#allocation5 + $0x700] sm:$0xff]
        %v522 = vld [vmem:[#allocation5 + $0x708] sm:$0xff]
        %v523 = vld [vmem:[#allocation5 + $0x710] sm:$0xff]
        %v524 = vld [vmem:[#allocation5 + $0x718] sm:$0xff]
        %v525 = vld [vmem:[#allocation5 + $0x720] sm:$0xff]
        %v526 = vld [vmem:[#allocation5 + $0x728] sm:$0xff]
        %v527 = vld [vmem:[#allocation5 + $0x730] sm:$0xff]
        %v528 = vld [vmem:[#allocation5 + $0x738] sm:$0xff]
        %v529 = vld [vmem:[#allocation5 + $0x740] sm:$0xff]
        %v530 = vld [vmem:[#allocation5 + $0x748] sm:$0xff]
        %v531 = vld [vmem:[#allocation5 + $0x750] sm:$0xff]
        %v532 = vld [vmem:[#allocation5 + $0x758] sm:$0xff]
        %v533 = vld [vmem:[#allocation5 + $0x760] sm:$0xff]
        %v534 = vld [vmem:[#allocation5 + $0x768] sm:$0xff]
        %v535 = vld [vmem:[#allocation5 + $0x770] sm:$0xff]
        %v536 = vld [vmem:[#allocation5 + $0x778] sm:$0xff]
        %v537 = vld [vmem:[#allocation5 + $0x780] sm:$0xff]
        %v538 = vld [vmem:[#allocation5 + $0x788] sm:$0xff]
        %v539 = vld [vmem:[#allocation5 + $0x790] sm:$0xff]
        %v540 = vld [vmem:[#allocation5 + $0x798] sm:$0xff]
        %v541 = vld [vmem:[#allocation5 + $0x7a0] sm:$0xff]
        %v542 = vld [vmem:[#allocation5 + $0x7a8] sm:$0xff]
        %v543 = vld [vmem:[#allocation5 + $0x7b0] sm:$0xff]
        %v544 = vld [vmem:[#allocation5 + $0x7b8] sm:$0xff]
        %v545 = vld [vmem:[#allocation5 + $0x7c0] sm:$0xff]
        %v546 = vld [vmem:[#allocation5 + $0x7c8] sm:$0xff]
        %v547 = vld [vmem:[#allocation5 + $0x7d0] sm:$0xff]
        %v548 = vld [vmem:[#allocation5 + $0x7d8] sm:$0xff]
        %v549 = vld [vmem:[#allocation5 + $0x7e0] sm:$0xff]
        %v550 = vld [vmem:[#allocation5 + $0x7e8] sm:$0xff]
        %v551 = vld [vmem:[#allocation5 + $0x7f0] sm:$0xff]
        %v552 = vld [vmem:[#allocation5 + $0x7f8] sm:$0xff]
        %v553 = vld [vmem:[#allocation5 + $0x800] sm:$0xff]
        %v554 = vld [vmem:[#allocation5 + $0x808] sm:$0xff]
        %v555 = vld [vmem:[#allocation5 + $0x810] sm:$0xff]
        %v556 = vld [vmem:[#allocation5 + $0x818] sm:$0xff]
        %v557 = vld [vmem:[#allocation5 + $0x820] sm:$0xff]
        %v558 = vld [vmem:[#allocation5 + $0x828] sm:$0xff]
        %v559 = vld [vmem:[#allocation5 + $0x830] sm:$0xff]
        %v560 = vld [vmem:[#allocation5 + $0x838] sm:$0xff]
        %v561 = vld [vmem:[#allocation5 + $0x840] sm:$0xff]
        %v562 = vld [vmem:[#allocation5 + $0x848] sm:$0xff]
        %v563 = vld [vmem:[#allocation5 + $0x850] sm:$0xff]
        %v564 = vld [vmem:[#allocation5 + $0x858] sm:$0xff]
        %v565 = vld [vmem:[#allocation5 + $0x860] sm:$0xff]
        %v566 = vld [vmem:[#allocation5 + $0x868] sm:$0xff]
        %v567 = vld [vmem:[#allocation5 + $0x870] sm:$0xff]
        %v568 = vld [vmem:[#allocation5 + $0x878] sm:$0xff]
        %v569 = vld [vmem:[#allocation5 + $0x880] sm:$0xff]
        %v570 = vld [vmem:[#allocation5 + $0x888] sm:$0xff]
        %v571 = vld [vmem:[#allocation5 + $0x890] sm:$0xff]
        %v572 = vld [vmem:[#allocation5 + $0x898] sm:$0xff]
        %v573 = vld [vmem:[#allocation5 + $0x8a0] sm:$0xff]
        %v574 = vld [vmem:[#allocation5 + $0x8a8] sm:$0xff]
        %v575 = vld [vmem:[#allocation5 + $0x8b0] sm:$0xff]
        %v576 = vld [vmem:[#allocation5 + $0x8b8] sm:$0xff]
        %v577 = vld [vmem:[#allocation5 + $0x8c0] sm:$0xff]
        %v578 = vld [vmem:[#allocation5 + $0x8c8] sm:$0xff]
        %v579 = vld [vmem:[#allocation5 + $0x8d0] sm:$0xff]
        %v580 = vld [vmem:[#allocation5 + $0x8d8] sm:$0xff]
        %v581 = vld [vmem:[#allocation5 + $0x8e0] sm:$0xff]
        %v582 = vld [vmem:[#allocation5 + $0x8e8] sm:$0xff]
        %v583 = vld [vmem:[#allocation5 + $0x8f0] sm:$0xff]
        %v584 = vld [vmem:[#allocation5 + $0x8f8] sm:$0xff]
        %v585 = vld [vmem:[#allocation5 + $0x900] sm:$0xff]
        %v586 = vld [vmem:[#allocation5 + $0x908] sm:$0xff]
        %v587 = vld [vmem:[#allocation5 + $0x910] sm:$0xff]
        %v588 = vld [vmem:[#allocation5 + $0x918] sm:$0xff]
        %v589 = vld [vmem:[#allocation5 + $0x920] sm:$0xff]
        %v590 = vld [vmem:[#allocation5 + $0x928] sm:$0xff]
        %v591 = vld [vmem:[#allocation5 + $0x930] sm:$0xff]
        %v592 = vld [vmem:[#allocation5 + $0x938] sm:$0xff]
        %v593 = vld [vmem:[#allocation5 + $0x940] sm:$0xff]
        %v594 = vld [vmem:[#allocation5 + $0x948] sm:$0xff]
        %v595 = vld [vmem:[#allocation5 + $0x950] sm:$0xff]
        %v596 = vld [vmem:[#allocation5 + $0x958] sm:$0xff]
        %v597 = vld [vmem:[#allocation5 + $0x960] sm:$0xff]
        %v598 = vld [vmem:[#allocation5 + $0x968] sm:$0xff]
        %v599 = vld [vmem:[#allocation5 + $0x970] sm:$0xff]
        %v600 = vld [vmem:[#allocation5 + $0x978] sm:$0xff]
        %v601 = vld [vmem:[#allocation5 + $0x980] sm:$0xff]
        %v602 = vld [vmem:[#allocation5 + $0x988] sm:$0xff]
        %v603 = vld [vmem:[#allocation5 + $0x990] sm:$0xff]
        %v604 = vld [vmem:[#allocation5 + $0x998] sm:$0xff]
        %v605 = vld [vmem:[#allocation5 + $0x9a0] sm:$0xff]
        %v606 = vld [vmem:[#allocation5 + $0x9a8] sm:$0xff]
        %v607 = vld [vmem:[#allocation5 + $0x9b0] sm:$0xff]
        %v608 = vld [vmem:[#allocation5 + $0x9b8] sm:$0xff]
        %v609 = vld [vmem:[#allocation5 + $0x9c0] sm:$0xff]
        %v610 = vld [vmem:[#allocation5 + $0x9c8] sm:$0xff]
        %v611 = vld [vmem:[#allocation5 + $0x9d0] sm:$0xff]
        %v612 = vld [vmem:[#allocation5 + $0x9d8] sm:$0xff]
        %v613 = vld [vmem:[#allocation5 + $0x9e0] sm:$0xff]
        %v614 = vld [vmem:[#allocation5 + $0x9e8] sm:$0xff]
        %v615 = vld [vmem:[#allocation5 + $0x9f0] sm:$0xff]
        %v616 = vld [vmem:[#allocation5 + $0x9f8] sm:$0xff]
        %v617 = vld [vmem:[#allocation5 + $0xa00] sm:$0xff]
        %v618 = vld [vmem:[#allocation5 + $0xa08] sm:$0xff]
        %v619 = vld [vmem:[#allocation5 + $0xa10] sm:$0xff]
        %v620 = vld [vmem:[#allocation5 + $0xa18] sm:$0xff]
        %v621 = vld [vmem:[#allocation5 + $0xa20] sm:$0xff]
        %v622 = vld [vmem:[#allocation5 + $0xa28] sm:$0xff]
        %v623 = vld [vmem:[#allocation5 + $0xa30] sm:$0xff]
        %v624 = vld [vmem:[#allocation5 + $0xa38] sm:$0xff]
        %v625 = vld [vmem:[#allocation5 + $0xa40] sm:$0xff]
        %v626 = vld [vmem:[#allocation5 + $0xa48] sm:$0xff]
        %v627 = vld [vmem:[#allocation5 + $0xa50] sm:$0xff]
        %v628 = vld [vmem:[#allocation5 + $0xa58] sm:$0xff]
        %v629 = vld [vmem:[#allocation5 + $0xa60] sm:$0xff]
        %v630 = vld [vmem:[#allocation5 + $0xa68] sm:$0xff]
        %v631 = vld [vmem:[#allocation5 + $0xa70] sm:$0xff]
        %v632 = vld [vmem:[#allocation5 + $0xa78] sm:$0xff]
        %v633 = vld [vmem:[#allocation5 + $0xa80] sm:$0xff]
        %v634 = vld [vmem:[#allocation5 + $0xa88] sm:$0xff]
        %v635 = vld [vmem:[#allocation5 + $0xa90] sm:$0xff]
        %v636 = vld [vmem:[#allocation5 + $0xa98] sm:$0xff]
        %v637 = vld [vmem:[#allocation5 + $0xaa0] sm:$0xff]
        %v638 = vld [vmem:[#allocation5 + $0xaa8] sm:$0xff]
        %v639 = vld [vmem:[#allocation5 + $0xab0] sm:$0xff]
        %v640 = vld [vmem:[#allocation5 + $0xab8] sm:$0xff]
        %v641 = vld [vmem:[#allocation5 + $0xac0] sm:$0xff]
        %v642 = vld [vmem:[#allocation5 + $0xac8] sm:$0xff]
        %v643 = vld [vmem:[#allocation5 + $0xad0] sm:$0xff]
        %v644 = vld [vmem:[#allocation5 + $0xad8] sm:$0xff]
        %v645 = vld [vmem:[#allocation5 + $0xae0] sm:$0xff]
        %v646 = vld [vmem:[#allocation5 + $0xae8] sm:$0xff]
        %v647 = vld [vmem:[#allocation5 + $0xaf0] sm:$0xff]
        %v648 = vld [vmem:[#allocation5 + $0xaf8] sm:$0xff]
        %v649 = vld [vmem:[#allocation5 + $0xb00] sm:$0xff]
        %v650 = vld [vmem:[#allocation5 + $0xb08] sm:$0xff]
        %v651 = vld [vmem:[#allocation5 + $0xb10] sm:$0xff]
        %v652 = vld [vmem:[#allocation5 + $0xb18] sm:$0xff]
        %v653 = vld [vmem:[#allocation5 + $0xb20] sm:$0xff]
        %v654 = vld [vmem:[#allocation5 + $0xb28] sm:$0xff]
        %v655 = vld [vmem:[#allocation5 + $0xb30] sm:$0xff]
        %v656 = vld [vmem:[#allocation5 + $0xb38] sm:$0xff]
        %v657 = vld [vmem:[#allocation5 + $0xb40] sm:$0xff]
        %v658 = vld [vmem:[#allocation5 + $0xb48] sm:$0xff]
        %v659 = vld [vmem:[#allocation5 + $0xb50] sm:$0xff]
        %v660 = vld [vmem:[#allocation5 + $0xb58] sm:$0xff]
        %v661 = vld [vmem:[#allocation5 + $0xb60] sm:$0xff]
        %v662 = vld [vmem:[#allocation5 + $0xb68] sm:$0xff]
        %v663 = vld [vmem:[#allocation5 + $0xb70] sm:$0xff]
        %v664 = vld [vmem:[#allocation5 + $0xb78] sm:$0xff]
        %v665 = vld [vmem:[#allocation5 + $0xb80] sm:$0xff]
        %v666 = vld [vmem:[#allocation5 + $0xb88] sm:$0xff]
        %v667 = vld [vmem:[#allocation5 + $0xb90] sm:$0xff]
        %v668 = vld [vmem:[#allocation5 + $0xb98] sm:$0xff]
        %v669 = vld [vmem:[#allocation5 + $0xba0] sm:$0xff]
        %v670 = vld [vmem:[#allocation5 + $0xba8] sm:$0xff]
        %v671 = vld [vmem:[#allocation5 + $0xbb0] sm:$0xff]
        %v672 = vld [vmem:[#allocation5 + $0xbb8] sm:$0xff]
        %v673 = vld [vmem:[#allocation5 + $0xbc0] sm:$0xff]
        %v674 = vld [vmem:[#allocation5 + $0xbc8] sm:$0xff]
        %v675 = vld [vmem:[#allocation5 + $0xbd0] sm:$0xff]
        %v676 = vld [vmem:[#allocation5 + $0xbd8] sm:$0xff]
        %v677 = vld [vmem:[#allocation5 + $0xbe0] sm:$0xff]
        %v678 = vld [vmem:[#allocation5 + $0xbe8] sm:$0xff]
        %v679 = vld [vmem:[#allocation5 + $0xbf0] sm:$0xff]
        %v680 = vld [vmem:[#allocation5 + $0xbf8] sm:$0xff]
        %v681 = vld [vmem:[#allocation5 + $0xc00] sm:$0xff]
        %v682 = vld [vmem:[#allocation5 + $0xc08] sm:$0xff]
        %v683 = vld [vmem:[#allocation5 + $0xc10] sm:$0xff]
        %v684 = vld [vmem:[#allocation5 + $0xc18] sm:$0xff]
        %v685 = vld [vmem:[#allocation5 + $0xc20] sm:$0xff]
        %v686 = vld [vmem:[#allocation5 + $0xc28] sm:$0xff]
        %v687 = vld [vmem:[#allocation5 + $0xc30] sm:$0xff]
        %v688 = vld [vmem:[#allocation5 + $0xc38] sm:$0xff]
        %v689 = vld [vmem:[#allocation5 + $0xc40] sm:$0xff]
        %v690 = vld [vmem:[#allocation5 + $0xc48] sm:$0xff]
        %v691 = vld [vmem:[#allocation5 + $0xc50] sm:$0xff]
        %v692 = vld [vmem:[#allocation5 + $0xc58] sm:$0xff]
        %v693 = vld [vmem:[#allocation5 + $0xc60] sm:$0xff]
        %v694 = vld [vmem:[#allocation5 + $0xc68] sm:$0xff]
        %v695 = vld [vmem:[#allocation5 + $0xc70] sm:$0xff]
        %v696 = vld [vmem:[#allocation5 + $0xc78] sm:$0xff]
        %v697 = vld [vmem:[#allocation5 + $0xc80] sm:$0xff]
        %v698 = vld [vmem:[#allocation5 + $0xc88] sm:$0xff]
        %v699 = vld [vmem:[#allocation5 + $0xc90] sm:$0xff]
        %v700 = vld [vmem:[#allocation5 + $0xc98] sm:$0xff]
        %v701 = vld [vmem:[#allocation5 + $0xca0] sm:$0xff]
        %v702 = vld [vmem:[#allocation5 + $0xca8] sm:$0xff]
        %v703 = vld [vmem:[#allocation5 + $0xcb0] sm:$0xff]
        %v704 = vld [vmem:[#allocation5 + $0xcb8] sm:$0xff]
        %v705 = vld [vmem:[#allocation5 + $0xcc0] sm:$0xff]
        %v706 = vld [vmem:[#allocation5 + $0xcc8] sm:$0xff]
        %v707 = vld [vmem:[#allocation5 + $0xcd0] sm:$0xff]
        %v708 = vld [vmem:[#allocation5 + $0xcd8] sm:$0xff]
        %v709 = vld [vmem:[#allocation5 + $0xce0] sm:$0xff]
        %v710 = vld [vmem:[#allocation5 + $0xce8] sm:$0xff]
        %v711 = vld [vmem:[#allocation5 + $0xcf0] sm:$0xff]
        %v712 = vld [vmem:[#allocation5 + $0xcf8] sm:$0xff]
        %v713 = vld [vmem:[#allocation7] sm:$0xff]
        %v714 = vld [vmem:[#allocation7 + $0x8] sm:$0x1f]
        %v717 = vlaneseq
        %v718 = vshrl.u32 %v717, 7
        %v719 = vsub.s32 0, %v718
        %v720 = vrot.slane %v713, %v719
        %v721 = vlaneseq
        %v722 = vshrl.u32 %v721, 7
        %v723 = vsub.s32 1, %v722
        %v724 = vrot.slane %v713, %v723
        %v725 = vlaneseq
        %v726 = vshrl.u32 %v725, 7
        %v727 = vsub.s32 2, %v726
        %v728 = vrot.slane %v713, %v727
        %v729 = vlaneseq
        %v730 = vshrl.u32 %v729, 7
        %v731 = vsub.s32 3, %v730
        %v732 = vrot.slane %v713, %v731
        %v733 = vlaneseq
        %v734 = vshrl.u32 %v733, 7
        %v735 = vsub.s32 4, %v734
        %v736 = vrot.slane %v713, %v735
        %v737 = vlaneseq
        %v738 = vshrl.u32 %v737, 7
        %v739 = vsub.s32 5, %v738
        %v740 = vrot.slane %v713, %v739
        %v741 = vlaneseq
        %v742 = vshrl.u32 %v741, 7
        %v743 = vsub.s32 6, %v742
        %v744 = vrot.slane %v713, %v743
        %v745 = vlaneseq
        %v746 = vshrl.u32 %v745, 7
        %v747 = vsub.s32 7, %v746
        %v748 = vrot.slane %v713, %v747
        %v749 = vlaneseq
        %v750 = vshrl.u32 %v749, 7
        %v751 = vsub.s32 0, %v750
        %v752 = vrot.slane %v714, %v751
        %v753 = vlaneseq
        %v754 = vshrl.u32 %v753, 7
        %v755 = vsub.s32 1, %v754
        %v756 = vrot.slane %v714, %v755
        %v757 = vlaneseq
        %v758 = vshrl.u32 %v757, 7
        %v759 = vsub.s32 2, %v758
        %v760 = vrot.slane %v714, %v759
        %v761 = vlaneseq
        %v762 = vshrl.u32 %v761, 7
        %v763 = vsub.s32 3, %v762
        %v764 = vrot.slane %v714, %v763
        %v765 = vlaneseq
        %v766 = vshrl.u32 %v765, 7
        %v767 = vsub.s32 4, %v766
        %v768 = vrot.slane %v714, %v767
        %782 = vmatprep.subr.mxu0 %v298
        %783 = vmatpush1.msra.mxu0 %v297
        %784 = vmatprep.subr.mxu0 %v311
        %785 = vmatpush1.msra.mxu0 %v310
        %786 = vmatprep.subr.mxu0 %v324
        %787 = vmatpush1.msra.mxu0 %v323
        %788 = vmatprep.subr.mxu0 %v337
        %789 = vmatpush1.msra.mxu0 %v336
        %790 = vmatprep.subr.mxu0 %v350
        %791 = vmatpush1.msra.mxu0 %v349
        %792 = vmatprep.subr.mxu0 %v363
        %793 = vmatpush1.msra.mxu0 %v362
        %794 = vmatprep.subr.mxu0 %v376
        %795 = vmatpush1.msra.mxu0 %v375
        %796 = vmatprep.subr.mxu0 %v389
        %797 = vmatpush1.msra.mxu0 %v388
        %798 = vmatprep.subr.mxu0 %v402
        %799 = vmatpush1.msra.mxu0 %v401
        %800 = vmatprep.subr.mxu0 %v415
        %801 = vmatpush1.msra.mxu0 %v414
        %802 = vmatprep.subr.mxu0 %v428
        %803 = vmatpush1.msra.mxu0 %v427
        %804 = vmatprep.subr.mxu0 %v441
        %805 = vmatpush1.msra.mxu0 %v440
        %806 = vmatprep.subr.mxu0 %v454
        %807 = vmatpush1.msra.mxu0 %v453
        %808 = vmatprep.subr.mxu0 %v467
        %809 = vmatpush1.msra.mxu0 %v466
        %810 = vmatprep.subr.mxu0 %v480
        %811 = vmatpush1.msra.mxu0 %v479
        %812 = vmatprep.subr.mxu0 %v493
        %813 = vmatpush1.msra.mxu0 %v492
        %814 = vmatprep.subr.mxu0 %v506
        %815 = vmatpush1.msra.mxu0 %v505
        %816 = vmatprep.subr.mxu0 %v519
        %817 = vmatpush1.msra.mxu0 %v518
        %818 = vmatprep.subr.mxu0 %v532
        %819 = vmatpush1.msra.mxu0 %v531
        %820 = vmatprep.subr.mxu0 %v545
        %821 = vmatpush1.msra.mxu0 %v544
        %822 = vmatprep.subr.mxu0 %v558
        %823 = vmatpush1.msra.mxu0 %v557
        %824 = vmatprep.subr.mxu0 %v571
        %825 = vmatpush1.msra.mxu0 %v570
        %826 = vmatprep.subr.mxu0 %v584
        %827 = vmatpush1.msra.mxu0 %v583
        %828 = vmatprep.subr.mxu0 %v597
        %829 = vmatpush1.msra.mxu0 %v596
        %830 = vmatprep.subr.mxu0 %v610
        %831 = vmatpush1.msra.mxu0 %v609
        %832 = vmatprep.subr.mxu0 %v623
        %833 = vmatpush1.msra.mxu0 %v622
        %834 = vmatprep.subr.mxu0 %v636
        %835 = vmatpush1.msra.mxu0 %v635
        %836 = vmatprep.subr.mxu0 %v649
        %837 = vmatpush1.msra.mxu0 %v648
        %838 = vmatprep.subr.mxu0 %v662
        %839 = vmatpush1.msra.mxu0 %v661
        %840 = vmatprep.subr.mxu0 %v675
        %841 = vmatpush1.msra.mxu0 %v674
        %842 = vmatprep.subr.mxu0 %v688
        %843 = vmatpush1.msra.mxu0 %v687
        %844 = vmatprep.subr.mxu0 %v701
        %845 = vmatpush1.msra.mxu0 %v700
        %846 = vmatprep.mubr.f32.mxu0 %v296
        %847 = vmatmul.mubr.f32.gmra.mrb[0].mxu0 %v295
        %v848 = vpop.f32.mrb[0].mxu0
        %v849 = vadd.f32 %v720, %v848
        %v850 = vpop.f32.mrb[0].mxu0
        %v851 = vadd.f32 %v724, %v850
        %852 = vdwg.mxu0
        %853 = vmatprep.subr.mxu0 %v300
        %854 = vmatpush1.msra.mxu0 %v299
        %855 = vmatprep.subr.mxu0 %v313
        %856 = vmatpush1.msra.mxu0 %v312
        %857 = vmatprep.subr.mxu0 %v326
        %858 = vmatpush1.msra.mxu0 %v325
        %859 = vmatprep.subr.mxu0 %v339
        %860 = vmatpush1.msra.mxu0 %v338
        %861 = vmatprep.subr.mxu0 %v352
        %862 = vmatpush1.msra.mxu0 %v351
        %863 = vmatprep.subr.mxu0 %v365
        %864 = vmatpush1.msra.mxu0 %v364
        %865 = vmatprep.subr.mxu0 %v378
        %866 = vmatpush1.msra.mxu0 %v377
        %867 = vmatprep.subr.mxu0 %v391
        %868 = vmatpush1.msra.mxu0 %v390
        %869 = vmatprep.subr.mxu0 %v404
        %870 = vmatpush1.msra.mxu0 %v403
        %871 = vmatprep.subr.mxu0 %v417
        %872 = vmatpush1.msra.mxu0 %v416
        %873 = vmatprep.subr.mxu0 %v430
        %874 = vmatpush1.msra.mxu0 %v429
        %875 = vmatprep.subr.mxu0 %v443
        %876 = vmatpush1.msra.mxu0 %v442
        %877 = vmatprep.subr.mxu0 %v456
        %878 = vmatpush1.msra.mxu0 %v455
        %879 = vmatprep.subr.mxu0 %v469
        %880 = vmatpush1.msra.mxu0 %v468
        %881 = vmatprep.subr.mxu0 %v482
        %882 = vmatpush1.msra.mxu0 %v481
        %883 = vmatprep.subr.mxu0 %v495
        %884 = vmatpush1.msra.mxu0 %v494
        %885 = vmatprep.subr.mxu0 %v508
        %886 = vmatpush1.msra.mxu0 %v507
        %887 = vmatprep.subr.mxu0 %v521
        %888 = vmatpush1.msra.mxu0 %v520
        %889 = vmatprep.subr.mxu0 %v534
        %890 = vmatpush1.msra.mxu0 %v533
        %891 = vmatprep.subr.mxu0 %v547
        %892 = vmatpush1.msra.mxu0 %v546
        %893 = vmatprep.subr.mxu0 %v560
        %894 = vmatpush1.msra.mxu0 %v559
        %895 = vmatprep.subr.mxu0 %v573
        %896 = vmatpush1.msra.mxu0 %v572
        %897 = vmatprep.subr.mxu0 %v586
        %898 = vmatpush1.msra.mxu0 %v585
        %899 = vmatprep.subr.mxu0 %v599
        %900 = vmatpush1.msra.mxu0 %v598
        %901 = vmatprep.subr.mxu0 %v612
        %902 = vmatpush1.msra.mxu0 %v611
        %903 = vmatprep.subr.mxu0 %v625
        %904 = vmatpush1.msra.mxu0 %v624
        %905 = vmatprep.subr.mxu0 %v638
        %906 = vmatpush1.msra.mxu0 %v637
        %907 = vmatprep.subr.mxu0 %v651
        %908 = vmatpush1.msra.mxu0 %v650
        %909 = vmatprep.subr.mxu0 %v664
        %910 = vmatpush1.msra.mxu0 %v663
        %911 = vmatprep.subr.mxu0 %v677
        %912 = vmatpush1.msra.mxu0 %v676
        %913 = vmatprep.subr.mxu0 %v690
        %914 = vmatpush1.msra.mxu0 %v689
        %915 = vmatprep.subr.mxu0 %v703
        %916 = vmatpush1.msra.mxu0 %v702
        %917 = vmatprep.mubr.f32.mxu0 %v296
        %918 = vmatmul.mubr.f32.gmra.mrb[0].mxu0 %v295
        %v919 = vpop.f32.mrb[0].mxu0
        %v920 = vadd.f32 %v728, %v919
        %v921 = vpop.f32.mrb[0].mxu0
        %v922 = vadd.f32 %v732, %v921
        %923 = vdwg.mxu0
        %924 = vmatprep.subr.mxu0 %v302
        %925 = vmatpush1.msra.mxu0 %v301
        %926 = vmatprep.subr.mxu0 %v315
        %927 = vmatpush1.msra.mxu0 %v314
        %928 = vmatprep.subr.mxu0 %v328
        %929 = vmatpush1.msra.mxu0 %v327
        %930 = vmatprep.subr.mxu0 %v341
        %931 = vmatpush1.msra.mxu0 %v340
        %932 = vmatprep.subr.mxu0 %v354
        %933 = vmatpush1.msra.mxu0 %v353
        %934 = vmatprep.subr.mxu0 %v367
        %935 = vmatpush1.msra.mxu0 %v366
        %936 = vmatprep.subr.mxu0 %v380
        %937 = vmatpush1.msra.mxu0 %v379
        %938 = vmatprep.subr.mxu0 %v393
        %939 = vmatpush1.msra.mxu0 %v392
        %940 = vmatprep.subr.mxu0 %v406
        %941 = vmatpush1.msra.mxu0 %v405
        %942 = vmatprep.subr.mxu0 %v419
        %943 = vmatpush1.msra.mxu0 %v418
        %944 = vmatprep.subr.mxu0 %v432
        %945 = vmatpush1.msra.mxu0 %v431
        %946 = vmatprep.subr.mxu0 %v445
        %947 = vmatpush1.msra.mxu0 %v444
        %948 = vmatprep.subr.mxu0 %v458
        %949 = vmatpush1.msra.mxu0 %v457
        %950 = vmatprep.subr.mxu0 %v471
        %951 = vmatpush1.msra.mxu0 %v470
        %952 = vmatprep.subr.mxu0 %v484
        %953 = vmatpush1.msra.mxu0 %v483
        %954 = vmatprep.subr.mxu0 %v497
        %955 = vmatpush1.msra.mxu0 %v496
        %956 = vmatprep.subr.mxu0 %v510
        %957 = vmatpush1.msra.mxu0 %v509
        %958 = vmatprep.subr.mxu0 %v523
        %959 = vmatpush1.msra.mxu0 %v522
        %960 = vmatprep.subr.mxu0 %v536
        %961 = vmatpush1.msra.mxu0 %v535
        %962 = vmatprep.subr.mxu0 %v549
        %963 = vmatpush1.msra.mxu0 %v548
        %964 = vmatprep.subr.mxu0 %v562
        %965 = vmatpush1.msra.mxu0 %v561
        %966 = vmatprep.subr.mxu0 %v575
        %967 = vmatpush1.msra.mxu0 %v574
        %968 = vmatprep.subr.mxu0 %v588
        %969 = vmatpush1.msra.mxu0 %v587
        %970 = vmatprep.subr.mxu0 %v601
        %971 = vmatpush1.msra.mxu0 %v600
        %972 = vmatprep.subr.mxu0 %v614
        %973 = vmatpush1.msra.mxu0 %v613
        %974 = vmatprep.subr.mxu0 %v627
        %975 = vmatpush1.msra.mxu0 %v626
        %976 = vmatprep.subr.mxu0 %v640
        %977 = vmatpush1.msra.mxu0 %v639
        %978 = vmatprep.subr.mxu0 %v653
        %979 = vmatpush1.msra.mxu0 %v652
        %980 = vmatprep.subr.mxu0 %v666
        %981 = vmatpush1.msra.mxu0 %v665
        %982 = vmatprep.subr.mxu0 %v679
        %983 = vmatpush1.msra.mxu0 %v678
        %984 = vmatprep.subr.mxu0 %v692
        %985 = vmatpush1.msra.mxu0 %v691
        %986 = vmatprep.subr.mxu0 %v705
        %987 = vmatpush1.msra.mxu0 %v704
        %988 = vmatprep.mubr.f32.mxu0 %v296
        %989 = vmatmul.mubr.f32.gmra.mrb[0].mxu0 %v295
        %v990 = vpop.f32.mrb[0].mxu0
        %v991 = vadd.f32 %v736, %v990
        %v992 = vpop.f32.mrb[0].mxu0
        %v993 = vadd.f32 %v740, %v992
        %994 = vdwg.mxu0
        %995 = vmatprep.subr.mxu0 %v304
        %996 = vmatpush1.msra.mxu0 %v303
        %997 = vmatprep.subr.mxu0 %v317
        %998 = vmatpush1.msra.mxu0 %v316
        %999 = vmatprep.subr.mxu0 %v330
        %1000 = vmatpush1.msra.mxu0 %v329
        %1001 = vmatprep.subr.mxu0 %v343
        %1002 = vmatpush1.msra.mxu0 %v342
        %1003 = vmatprep.subr.mxu0 %v356
        %1004 = vmatpush1.msra.mxu0 %v355
        %1005 = vmatprep.subr.mxu0 %v369
        %1006 = vmatpush1.msra.mxu0 %v368
        %1007 = vmatprep.subr.mxu0 %v382
        %1008 = vmatpush1.msra.mxu0 %v381
        %1009 = vmatprep.subr.mxu0 %v395
        %1010 = vmatpush1.msra.mxu0 %v394
        %1011 = vmatprep.subr.mxu0 %v408
        %1012 = vmatpush1.msra.mxu0 %v407
        %1013 = vmatprep.subr.mxu0 %v421
        %1014 = vmatpush1.msra.mxu0 %v420
        %1015 = vmatprep.subr.mxu0 %v434
        %1016 = vmatpush1.msra.mxu0 %v433
        %1017 = vmatprep.subr.mxu0 %v447
        %1018 = vmatpush1.msra.mxu0 %v446
        %1019 = vmatprep.subr.mxu0 %v460
        %1020 = vmatpush1.msra.mxu0 %v459
        %1021 = vmatprep.subr.mxu0 %v473
        %1022 = vmatpush1.msra.mxu0 %v472
        %1023 = vmatprep.subr.mxu0 %v486
        %1024 = vmatpush1.msra.mxu0 %v485
        %1025 = vmatprep.subr.mxu0 %v499
        %1026 = vmatpush1.msra.mxu0 %v498
        %1027 = vmatprep.subr.mxu0 %v512
        %1028 = vmatpush1.msra.mxu0 %v511
        %1029 = vmatprep.subr.mxu0 %v525
        %1030 = vmatpush1.msra.mxu0 %v524
        %1031 = vmatprep.subr.mxu0 %v538
        %1032 = vmatpush1.msra.mxu0 %v537
        %1033 = vmatprep.subr.mxu0 %v551
        %1034 = vmatpush1.msra.mxu0 %v550
        %1035 = vmatprep.subr.mxu0 %v564
        %1036 = vmatpush1.msra.mxu0 %v563
        %1037 = vmatprep.subr.mxu0 %v577
        %1038 = vmatpush1.msra.mxu0 %v576
        %1039 = vmatprep.subr.mxu0 %v590
        %1040 = vmatpush1.msra.mxu0 %v589
        %1041 = vmatprep.subr.mxu0 %v603
        %1042 = vmatpush1.msra.mxu0 %v602
        %1043 = vmatprep.subr.mxu0 %v616
        %1044 = vmatpush1.msra.mxu0 %v615
        %1045 = vmatprep.subr.mxu0 %v629
        %1046 = vmatpush1.msra.mxu0 %v628
        %1047 = vmatprep.subr.mxu0 %v642
        %1048 = vmatpush1.msra.mxu0 %v641
        %1049 = vmatprep.subr.mxu0 %v655
        %1050 = vmatpush1.msra.mxu0 %v654
        %1051 = vmatprep.subr.mxu0 %v668
        %1052 = vmatpush1.msra.mxu0 %v667
        %1053 = vmatprep.subr.mxu0 %v681
        %1054 = vmatpush1.msra.mxu0 %v680
        %1055 = vmatprep.subr.mxu0 %v694
        %1056 = vmatpush1.msra.mxu0 %v693
        %1057 = vmatprep.subr.mxu0 %v707
        %1058 = vmatpush1.msra.mxu0 %v706
        %1059 = vmatprep.mubr.f32.mxu0 %v296
        %1060 = vmatmul.mubr.f32.gmra.mrb[0].mxu0 %v295
        %v1061 = vpop.f32.mrb[0].mxu0
        %v1062 = vadd.f32 %v744, %v1061
        %v1063 = vpop.f32.mrb[0].mxu0
        %v1064 = vadd.f32 %v748, %v1063
        %1065 = vdwg.mxu0
        %1066 = vmatprep.subr.mxu0 %v306
        %1067 = vmatpush1.msra.mxu0 %v305
        %1068 = vmatprep.subr.mxu0 %v319
        %1069 = vmatpush1.msra.mxu0 %v318
        %1070 = vmatprep.subr.mxu0 %v332
        %1071 = vmatpush1.msra.mxu0 %v331
        %1072 = vmatprep.subr.mxu0 %v345
        %1073 = vmatpush1.msra.mxu0 %v344
        %1074 = vmatprep.subr.mxu0 %v358
        %1075 = vmatpush1.msra.mxu0 %v357
        %1076 = vmatprep.subr.mxu0 %v371
        %1077 = vmatpush1.msra.mxu0 %v370
        %1078 = vmatprep.subr.mxu0 %v384
        %1079 = vmatpush1.msra.mxu0 %v383
        %1080 = vmatprep.subr.mxu0 %v397
        %1081 = vmatpush1.msra.mxu0 %v396
        %1082 = vmatprep.subr.mxu0 %v410
        %1083 = vmatpush1.msra.mxu0 %v409
        %1084 = vmatprep.subr.mxu0 %v423
        %1085 = vmatpush1.msra.mxu0 %v422
        %1086 = vmatprep.subr.mxu0 %v436
        %1087 = vmatpush1.msra.mxu0 %v435
        %1088 = vmatprep.subr.mxu0 %v449
        %1089 = vmatpush1.msra.mxu0 %v448
        %1090 = vmatprep.subr.mxu0 %v462
        %1091 = vmatpush1.msra.mxu0 %v461
        %1092 = vmatprep.subr.mxu0 %v475
        %1093 = vmatpush1.msra.mxu0 %v474
        %1094 = vmatprep.subr.mxu0 %v488
        %1095 = vmatpush1.msra.mxu0 %v487
        %1096 = vmatprep.subr.mxu0 %v501
        %1097 = vmatpush1.msra.mxu0 %v500
        %1098 = vmatprep.subr.mxu0 %v514
        %1099 = vmatpush1.msra.mxu0 %v513
        %1100 = vmatprep.subr.mxu0 %v527
        %1101 = vmatpush1.msra.mxu0 %v526
        %1102 = vmatprep.subr.mxu0 %v540
        %1103 = vmatpush1.msra.mxu0 %v539
        %1104 = vmatprep.subr.mxu0 %v553
        %1105 = vmatpush1.msra.mxu0 %v552
        %1106 = vmatprep.subr.mxu0 %v566
        %1107 = vmatpush1.msra.mxu0 %v565
        %1108 = vmatprep.subr.mxu0 %v579
        %1109 = vmatpush1.msra.mxu0 %v578
        %1110 = vmatprep.subr.mxu0 %v592
        %1111 = vmatpush1.msra.mxu0 %v591
        %1112 = vmatprep.subr.mxu0 %v605
        %1113 = vmatpush1.msra.mxu0 %v604
        %1114 = vmatprep.subr.mxu0 %v618
        %1115 = vmatpush1.msra.mxu0 %v617
        %1116 = vmatprep.subr.mxu0 %v631
        %1117 = vmatpush1.msra.mxu0 %v630
        %1118 = vmatprep.subr.mxu0 %v644
        %1119 = vmatpush1.msra.mxu0 %v643
        %1120 = vmatprep.subr.mxu0 %v657
        %1121 = vmatpush1.msra.mxu0 %v656
        %1122 = vmatprep.subr.mxu0 %v670
        %1123 = vmatpush1.msra.mxu0 %v669
        %1124 = vmatprep.subr.mxu0 %v683
        %1125 = vmatpush1.msra.mxu0 %v682
        %1126 = vmatprep.subr.mxu0 %v696
        %1127 = vmatpush1.msra.mxu0 %v695
        %1128 = vmatprep.subr.mxu0 %v709
        %1129 = vmatpush1.msra.mxu0 %v708
        %1130 = vmatprep.mubr.f32.mxu0 %v296
        %1131 = vmatmul.mubr.f32.gmra.mrb[0].mxu0 %v295
        %v1132 = vpop.f32.mrb[0].mxu0
        %v1133 = vadd.f32 %v752, %v1132
        %v1134 = vpop.f32.mrb[0].mxu0
        %v1135 = vadd.f32 %v756, %v1134
        %1136 = vdwg.mxu0
        %1137 = vmatprep.subr.mxu0 %v308
        %1138 = vmatpush1.msra.mxu0 %v307
        %1139 = vmatprep.subr.mxu0 %v321
        %1140 = vmatpush1.msra.mxu0 %v320
        %1141 = vmatprep.subr.mxu0 %v334
        %1142 = vmatpush1.msra.mxu0 %v333
        %1143 = vmatprep.subr.mxu0 %v347
        %1144 = vmatpush1.msra.mxu0 %v346
        %1145 = vmatprep.subr.mxu0 %v360
        %1146 = vmatpush1.msra.mxu0 %v359
        %1147 = vmatprep.subr.mxu0 %v373
        %1148 = vmatpush1.msra.mxu0 %v372
        %1149 = vmatprep.subr.mxu0 %v386
        %1150 = vmatpush1.msra.mxu0 %v385
        %1151 = vmatprep.subr.mxu0 %v399
        %1152 = vmatpush1.msra.mxu0 %v398
        %1153 = vmatprep.subr.mxu0 %v412
        %1154 = vmatpush1.msra.mxu0 %v411
        %1155 = vmatprep.subr.mxu0 %v425
        %1156 = vmatpush1.msra.mxu0 %v424
        %1157 = vmatprep.subr.mxu0 %v438
        %1158 = vmatpush1.msra.mxu0 %v437
        %1159 = vmatprep.subr.mxu0 %v451
        %1160 = vmatpush1.msra.mxu0 %v450
        %1161 = vmatprep.subr.mxu0 %v464
        %1162 = vmatpush1.msra.mxu0 %v463
        %1163 = vmatprep.subr.mxu0 %v477
        %1164 = vmatpush1.msra.mxu0 %v476
        %1165 = vmatprep.subr.mxu0 %v490
        %1166 = vmatpush1.msra.mxu0 %v489
        %1167 = vmatprep.subr.mxu0 %v503
        %1168 = vmatpush1.msra.mxu0 %v502
        %1169 = vmatprep.subr.mxu0 %v516
        %1170 = vmatpush1.msra.mxu0 %v515
        %1171 = vmatprep.subr.mxu0 %v529
        %1172 = vmatpush1.msra.mxu0 %v528
        %1173 = vmatprep.subr.mxu0 %v542
        %1174 = vmatpush1.msra.mxu0 %v541
        %1175 = vmatprep.subr.mxu0 %v555
        %1176 = vmatpush1.msra.mxu0 %v554
        %1177 = vmatprep.subr.mxu0 %v568
        %1178 = vmatpush1.msra.mxu0 %v567
        %1179 = vmatprep.subr.mxu0 %v581
        %1180 = vmatpush1.msra.mxu0 %v580
        %1181 = vmatprep.subr.mxu0 %v594
        %1182 = vmatpush1.msra.mxu0 %v593
        %1183 = vmatprep.subr.mxu0 %v607
        %1184 = vmatpush1.msra.mxu0 %v606
        %1185 = vmatprep.subr.mxu0 %v620
        %1186 = vmatpush1.msra.mxu0 %v619
        %1187 = vmatprep.subr.mxu0 %v633
        %1188 = vmatpush1.msra.mxu0 %v632
        %1189 = vmatprep.subr.mxu0 %v646
        %1190 = vmatpush1.msra.mxu0 %v645
        %1191 = vmatprep.subr.mxu0 %v659
        %1192 = vmatpush1.msra.mxu0 %v658
        %1193 = vmatprep.subr.mxu0 %v672
        %1194 = vmatpush1.msra.mxu0 %v671
        %1195 = vmatprep.subr.mxu0 %v685
        %1196 = vmatpush1.msra.mxu0 %v684
        %1197 = vmatprep.subr.mxu0 %v698
        %1198 = vmatpush1.msra.mxu0 %v697
        %1199 = vmatprep.subr.mxu0 %v711
        %1200 = vmatpush1.msra.mxu0 %v710
        %1201 = vmatprep.mubr.f32.mxu0 %v296
        %1202 = vmatmul.mubr.f32.gmra.mrb[0].mxu0 %v295
        %v1203 = vpop.f32.mrb[0].mxu0
        %v1204 = vadd.f32 %v760, %v1203
        %v1205 = vpop.f32.mrb[0].mxu0
        %v1206 = vadd.f32 %v764, %v1205
        %1207 = vdwg.mxu0
        %1208 = vmatprep.subr.mxu0 0.0
        %1209 = vmatpush1.msra.mxu0 %v309
        %1210 = vmatprep.subr.mxu0 0.0
        %1211 = vmatpush1.msra.mxu0 %v322
        %1212 = vmatprep.subr.mxu0 0.0
        %1213 = vmatpush1.msra.mxu0 %v335
        %1214 = vmatprep.subr.mxu0 0.0
        %1215 = vmatpush1.msra.mxu0 %v348
        %1216 = vmatprep.subr.mxu0 0.0
        %1217 = vmatpush1.msra.mxu0 %v361
        %1218 = vmatprep.subr.mxu0 0.0
        %1219 = vmatpush1.msra.mxu0 %v374
        %1220 = vmatprep.subr.mxu0 0.0
        %1221 = vmatpush1.msra.mxu0 %v387
        %1222 = vmatprep.subr.mxu0 0.0
        %1223 = vmatpush1.msra.mxu0 %v400
        %1224 = vmatprep.subr.mxu0 0.0
        %1225 = vmatpush1.msra.mxu0 %v413
        %1226 = vmatprep.subr.mxu0 0.0
        %1227 = vmatpush1.msra.mxu0 %v426
        %1228 = vmatprep.subr.mxu0 0.0
        %1229 = vmatpush1.msra.mxu0 %v439
        %1230 = vmatprep.subr.mxu0 0.0
        %1231 = vmatpush1.msra.mxu0 %v452
        %1232 = vmatprep.subr.mxu0 0.0
        %1233 = vmatpush1.msra.mxu0 %v465
        %1234 = vmatprep.subr.mxu0 0.0
        %1235 = vmatpush1.msra.mxu0 %v478
        %1236 = vmatprep.subr.mxu0 0.0
        %1237 = vmatpush1.msra.mxu0 %v491
        %1238 = vmatprep.subr.mxu0 0.0
        %1239 = vmatpush1.msra.mxu0 %v504
        %1240 = vmatprep.subr.mxu0 0.0
        %1241 = vmatpush1.msra.mxu0 %v517
        %1242 = vmatprep.subr.mxu0 0.0
        %1243 = vmatpush1.msra.mxu0 %v530
        %1244 = vmatprep.subr.mxu0 0.0
        %1245 = vmatpush1.msra.mxu0 %v543
        %1246 = vmatprep.subr.mxu0 0.0
        %1247 = vmatpush1.msra.mxu0 %v556
        %1248 = vmatprep.subr.mxu0 0.0
        %1249 = vmatpush1.msra.mxu0 %v569
        %1250 = vmatprep.subr.mxu0 0.0
        %1251 = vmatpush1.msra.mxu0 %v582
        %1252 = vmatprep.subr.mxu0 0.0
        %1253 = vmatpush1.msra.mxu0 %v595
        %1254 = vmatprep.subr.mxu0 0.0
        %1255 = vmatpush1.msra.mxu0 %v608
        %1256 = vmatprep.subr.mxu0 0.0
        %1257 = vmatpush1.msra.mxu0 %v621
        %1258 = vmatprep.subr.mxu0 0.0
        %1259 = vmatpush1.msra.mxu0 %v634
        %1260 = vmatprep.subr.mxu0 0.0
        %1261 = vmatpush1.msra.mxu0 %v647
        %1262 = vmatprep.subr.mxu0 0.0
        %1263 = vmatpush1.msra.mxu0 %v660
        %1264 = vmatprep.subr.mxu0 0.0
        %1265 = vmatpush1.msra.mxu0 %v673
        %1266 = vmatprep.subr.mxu0 0.0
        %1267 = vmatpush1.msra.mxu0 %v686
        %1268 = vmatprep.subr.mxu0 0.0
        %1269 = vmatpush1.msra.mxu0 %v699
        %1270 = vmatprep.subr.mxu0 0.0
        %1271 = vmatpush1.msra.mxu0 %v712
        %1272 = vmatprep.mubr.f32.mxu0 %v296
        %1273 = vmatmul.mubr.f32.gmra.mrb[0].mxu0 %v295
        %v1274 = vpop.f32.mrb[0].mxu0
        %v1275 = vadd.f32 %v768, %v1274
        %v1276 = vpop.f32.mrb[0].mxu0
        %1277 = vdwg.mxu0
        %vm1278 = vcmp.gt.f32.partialorder %v849, 0.0
        %vm1279 = vcmp.gt.f32.partialorder %v851, 0.0
        %vm1280 = vcmp.gt.f32.partialorder %v920, 0.0
        %vm1281 = vcmp.gt.f32.partialorder %v922, 0.0
        %vm1282 = vcmp.gt.f32.partialorder %v991, 0.0
        %vm1283 = vcmp.gt.f32.partialorder %v993, 0.0
        %vm1284 = vcmp.gt.f32.partialorder %v1062, 0.0
        %vm1285 = vcmp.gt.f32.partialorder %v1064, 0.0
        %vm1286 = vcmp.gt.f32.partialorder %v1133, 0.0
        %vm1287 = vcmp.gt.f32.partialorder %v1135, 0.0
        %vm1288 = vcmp.gt.f32.partialorder %v1204, 0.0
        %vm1289 = vcmp.gt.f32.partialorder %v1206, 0.0
        %vm1290 = vcmp.gt.f32.partialorder %v1275, 0.0
        %v1291 = vmul.f32 %v849, 0.01
        %v1292 = vmul.f32 %v851, 0.01
        %v1293 = vmul.f32 %v920, 0.01
        %v1294 = vmul.f32 %v922, 0.01
        %v1295 = vmul.f32 %v991, 0.01
        %v1296 = vmul.f32 %v993, 0.01
        %v1297 = vmul.f32 %v1062, 0.01
        %v1298 = vmul.f32 %v1064, 0.01
        %v1299 = vmul.f32 %v1133, 0.01
        %v1300 = vmul.f32 %v1135, 0.01
        %v1301 = vmul.f32 %v1204, 0.01
        %v1302 = vmul.f32 %v1206, 0.01
        %v1303 = vmul.f32 %v1275, 0.01
        %v1304 = vsel %vm1278, %v849, %v1291
        %v1305 = vsel %vm1279, %v851, %v1292
        %v1306 = vsel %vm1280, %v920, %v1293
        %v1307 = vsel %vm1281, %v922, %v1294
        %v1308 = vsel %vm1282, %v991, %v1295
        %v1309 = vsel %vm1283, %v993, %v1296
        %v1310 = vsel %vm1284, %v1062, %v1297
        %v1311 = vsel %vm1285, %v1064, %v1298
        %v1312 = vsel %vm1286, %v1133, %v1299
        %v1313 = vsel %vm1287, %v1135, %v1300
        %v1314 = vsel %vm1288, %v1204, %v1301
        %v1315 = vsel %vm1289, %v1206, %v1302
        %v1316 = vsel %vm1290, %v1275, %v1303
        %v1317 = vld [vmem:[#allocation8] sm:$0xff]
        %v1318 = vld [vmem:[#allocation8 + $0x8] sm:$0xff]
        %v1319 = vld [vmem:[#allocation8 + $0x10] sm:$0xff]
        %v1320 = vld [vmem:[#allocation8 + $0x18] sm:$0xff]
        %v1321 = vld [vmem:[#allocation8 + $0x20] sm:$0xff]
        %v1322 = vld [vmem:[#allocation8 + $0x28] sm:$0xff]
        %v1323 = vld [vmem:[#allocation8 + $0x30] sm:$0xff]
        %v1324 = vld [vmem:[#allocation8 + $0x38] sm:$0xff]
        %v1325 = vld [vmem:[#allocation8 + $0x40] sm:$0xff]
        %v1326 = vld [vmem:[#allocation8 + $0x48] sm:$0xff]
        %v1327 = vld [vmem:[#allocation8 + $0x50] sm:$0xff]
        %v1328 = vld [vmem:[#allocation8 + $0x58] sm:$0xff]
        %v1329 = vld [vmem:[#allocation8 + $0x60] sm:$0xff]
        %v1330 = vld [vmem:[#allocation8 + $0x68] sm:$0xff]
        %v1331 = vld [vmem:[#allocation8 + $0x70] sm:$0xff]
        %v1332 = vld [vmem:[#allocation8 + $0x78] sm:$0xff]
        %v1333 = vld [vmem:[#allocation8 + $0x80] sm:$0xff]
        %v1334 = vld [vmem:[#allocation8 + $0x88] sm:$0xff]
        %v1335 = vld [vmem:[#allocation8 + $0x90] sm:$0xff]
        %v1336 = vld [vmem:[#allocation8 + $0x98] sm:$0xff]
        %v1337 = vld [vmem:[#allocation8 + $0xa0] sm:$0xff]
        %v1338 = vld [vmem:[#allocation8 + $0xa8] sm:$0xff]
        %v1339 = vld [vmem:[#allocation8 + $0xb0] sm:$0xff]
        %v1340 = vld [vmem:[#allocation8 + $0xb8] sm:$0xff]
        %v1341 = vld [vmem:[#allocation8 + $0xc0] sm:$0xff]
        %v1342 = vld [vmem:[#allocation8 + $0xc8] sm:$0xff]
        %v1343 = vld [vmem:[#allocation8 + $0xd0] sm:$0xff]
        %v1344 = vld [vmem:[#allocation8 + $0xd8] sm:$0xff]
        %v1345 = vld [vmem:[#allocation8 + $0xe0] sm:$0xff]
        %v1346 = vld [vmem:[#allocation8 + $0xe8] sm:$0xff]
        %v1347 = vld [vmem:[#allocation8 + $0xf0] sm:$0xff]
        %v1348 = vld [vmem:[#allocation8 + $0xf8] sm:$0xff]
        %v1349 = vld [vmem:[#allocation8 + $0x100] sm:$0xff]
        %v1350 = vld [vmem:[#allocation8 + $0x108] sm:$0xff]
        %v1351 = vld [vmem:[#allocation8 + $0x110] sm:$0xff]
        %v1352 = vld [vmem:[#allocation8 + $0x118] sm:$0xff]
        %v1353 = vld [vmem:[#allocation8 + $0x120] sm:$0xff]
        %v1354 = vld [vmem:[#allocation8 + $0x128] sm:$0xff]
        %v1355 = vld [vmem:[#allocation8 + $0x130] sm:$0xff]
        %v1356 = vld [vmem:[#allocation8 + $0x138] sm:$0xff]
        %v1357 = vld [vmem:[#allocation8 + $0x140] sm:$0xff]
        %v1358 = vld [vmem:[#allocation8 + $0x148] sm:$0xff]
        %v1359 = vld [vmem:[#allocation8 + $0x150] sm:$0xff]
        %v1360 = vld [vmem:[#allocation8 + $0x158] sm:$0xff]
        %v1361 = vld [vmem:[#allocation8 + $0x160] sm:$0xff]
        %v1362 = vld [vmem:[#allocation8 + $0x168] sm:$0xff]
        %v1363 = vld [vmem:[#allocation8 + $0x170] sm:$0xff]
        %v1364 = vld [vmem:[#allocation8 + $0x178] sm:$0xff]
        %v1365 = vld [vmem:[#allocation8 + $0x180] sm:$0xff]
        %v1366 = vld [vmem:[#allocation8 + $0x188] sm:$0xff]
        %v1367 = vld [vmem:[#allocation8 + $0x190] sm:$0xff]
        %v1368 = vld [vmem:[#allocation8 + $0x198] sm:$0xff]
        %v1369 = vld [vmem:[#allocation8 + $0x1a0] sm:$0xff]
        %v1370 = vld [vmem:[#allocation8 + $0x1a8] sm:$0xff]
        %v1371 = vld [vmem:[#allocation8 + $0x1b0] sm:$0xff]
        %v1372 = vld [vmem:[#allocation8 + $0x1b8] sm:$0xff]
        %v1373 = vld [vmem:[#allocation8 + $0x1c0] sm:$0xff]
        %v1374 = vld [vmem:[#allocation8 + $0x1c8] sm:$0xff]
        %v1375 = vld [vmem:[#allocation8 + $0x1d0] sm:$0xff]
        %v1376 = vld [vmem:[#allocation8 + $0x1d8] sm:$0xff]
        %v1377 = vld [vmem:[#allocation8 + $0x1e0] sm:$0xff]
        %v1378 = vld [vmem:[#allocation8 + $0x1e8] sm:$0xff]
        %v1379 = vld [vmem:[#allocation8 + $0x1f0] sm:$0xff]
        %v1380 = vld [vmem:[#allocation8 + $0x1f8] sm:$0xff]
        %v1381 = vld [vmem:[#allocation8 + $0x200] sm:$0xff]
        %v1382 = vld [vmem:[#allocation8 + $0x208] sm:$0xff]
        %v1383 = vld [vmem:[#allocation8 + $0x210] sm:$0xff]
        %v1384 = vld [vmem:[#allocation8 + $0x218] sm:$0xff]
        %v1385 = vld [vmem:[#allocation8 + $0x220] sm:$0xff]
        %v1386 = vld [vmem:[#allocation8 + $0x228] sm:$0xff]
        %v1387 = vld [vmem:[#allocation8 + $0x230] sm:$0xff]
        %v1388 = vld [vmem:[#allocation8 + $0x238] sm:$0xff]
        %v1389 = vld [vmem:[#allocation8 + $0x240] sm:$0xff]
        %v1390 = vld [vmem:[#allocation8 + $0x248] sm:$0xff]
        %v1391 = vld [vmem:[#allocation8 + $0x250] sm:$0xff]
        %v1392 = vld [vmem:[#allocation8 + $0x258] sm:$0xff]
        %v1393 = vld [vmem:[#allocation8 + $0x260] sm:$0xff]
        %v1394 = vld [vmem:[#allocation8 + $0x268] sm:$0xff]
        %v1395 = vld [vmem:[#allocation8 + $0x270] sm:$0xff]
        %v1396 = vld [vmem:[#allocation8 + $0x278] sm:$0xff]
        %v1397 = vld [vmem:[#allocation8 + $0x280] sm:$0xff]
        %v1398 = vld [vmem:[#allocation8 + $0x288] sm:$0xff]
        %v1399 = vld [vmem:[#allocation8 + $0x290] sm:$0xff]
        %v1400 = vld [vmem:[#allocation8 + $0x298] sm:$0xff]
        %v1401 = vld [vmem:[#allocation8 + $0x2a0] sm:$0xff]
        %v1402 = vld [vmem:[#allocation8 + $0x2a8] sm:$0xff]
        %v1403 = vld [vmem:[#allocation8 + $0x2b0] sm:$0xff]
        %v1404 = vld [vmem:[#allocation8 + $0x2b8] sm:$0xff]
        %v1405 = vld [vmem:[#allocation8 + $0x2c0] sm:$0xff]
        %v1406 = vld [vmem:[#allocation8 + $0x2c8] sm:$0xff]
        %v1407 = vld [vmem:[#allocation8 + $0x2d0] sm:$0xff]
        %v1408 = vld [vmem:[#allocation8 + $0x2d8] sm:$0xff]
        %v1409 = vld [vmem:[#allocation8 + $0x2e0] sm:$0xff]
        %v1410 = vld [vmem:[#allocation8 + $0x2e8] sm:$0xff]
        %v1411 = vld [vmem:[#allocation8 + $0x2f0] sm:$0xff]
        %v1412 = vld [vmem:[#allocation8 + $0x2f8] sm:$0xff]
        %v1413 = vld [vmem:[#allocation8 + $0x300] sm:$0xff]
        %v1414 = vld [vmem:[#allocation8 + $0x308] sm:$0xff]
        %v1415 = vld [vmem:[#allocation8 + $0x310] sm:$0xff]
        %v1416 = vld [vmem:[#allocation8 + $0x318] sm:$0xff]
        %v1417 = vld [vmem:[#allocation8 + $0x320] sm:$0xff]
        %v1418 = vld [vmem:[#allocation8 + $0x328] sm:$0xff]
        %v1419 = vld [vmem:[#allocation8 + $0x330] sm:$0xff]
        %v1420 = vld [vmem:[#allocation8 + $0x338] sm:$0xff]
        %v1421 = vld [vmem:[#allocation8 + $0x340] sm:$0xff]
        %v1422 = vld [vmem:[#allocation8 + $0x348] sm:$0xff]
        %v1423 = vld [vmem:[#allocation8 + $0x350] sm:$0xff]
        %v1424 = vld [vmem:[#allocation8 + $0x358] sm:$0xff]
        %v1425 = vld [vmem:[#allocation8 + $0x360] sm:$0xff]
        %v1426 = vld [vmem:[#allocation8 + $0x368] sm:$0xff]
        %v1427 = vld [vmem:[#allocation8 + $0x370] sm:$0xff]
        %v1428 = vld [vmem:[#allocation8 + $0x378] sm:$0xff]
        %v1429 = vld [vmem:[#allocation8 + $0x380] sm:$0xff]
        %v1430 = vld [vmem:[#allocation8 + $0x388] sm:$0xff]
        %v1431 = vld [vmem:[#allocation8 + $0x390] sm:$0xff]
        %v1432 = vld [vmem:[#allocation8 + $0x398] sm:$0xff]
        %v1433 = vld [vmem:[#allocation8 + $0x3a0] sm:$0xff]
        %v1434 = vld [vmem:[#allocation8 + $0x3a8] sm:$0xff]
        %v1435 = vld [vmem:[#allocation8 + $0x3b0] sm:$0xff]
        %v1436 = vld [vmem:[#allocation8 + $0x3b8] sm:$0xff]
        %v1437 = vld [vmem:[#allocation8 + $0x3c0] sm:$0xff]
        %v1438 = vld [vmem:[#allocation8 + $0x3c8] sm:$0xff]
        %v1439 = vld [vmem:[#allocation8 + $0x3d0] sm:$0xff]
        %v1440 = vld [vmem:[#allocation8 + $0x3d8] sm:$0xff]
        %v1441 = vld [vmem:[#allocation8 + $0x3e0] sm:$0xff]
        %v1442 = vld [vmem:[#allocation8 + $0x3e8] sm:$0xff]
        %v1443 = vld [vmem:[#allocation8 + $0x3f0] sm:$0xff]
        %v1444 = vld [vmem:[#allocation8 + $0x3f8] sm:$0xff]
        %v1445 = vld [vmem:[#allocation8 + $0x400] sm:$0xff]
        %v1446 = vld [vmem:[#allocation8 + $0x408] sm:$0xff]
        %v1447 = vld [vmem:[#allocation8 + $0x410] sm:$0xff]
        %v1448 = vld [vmem:[#allocation8 + $0x418] sm:$0xff]
        %v1449 = vld [vmem:[#allocation8 + $0x420] sm:$0xff]
        %v1450 = vld [vmem:[#allocation8 + $0x428] sm:$0xff]
        %v1451 = vld [vmem:[#allocation8 + $0x430] sm:$0xff]
        %v1452 = vld [vmem:[#allocation8 + $0x438] sm:$0xff]
        %v1453 = vld [vmem:[#allocation8 + $0x440] sm:$0xff]
        %v1454 = vld [vmem:[#allocation8 + $0x448] sm:$0xff]
        %v1455 = vld [vmem:[#allocation8 + $0x450] sm:$0xff]
        %v1456 = vld [vmem:[#allocation8 + $0x458] sm:$0xff]
        %v1457 = vld [vmem:[#allocation8 + $0x460] sm:$0xff]
        %v1458 = vld [vmem:[#allocation8 + $0x468] sm:$0xff]
        %v1459 = vld [vmem:[#allocation8 + $0x470] sm:$0xff]
        %v1460 = vld [vmem:[#allocation8 + $0x478] sm:$0xff]
        %v1461 = vld [vmem:[#allocation8 + $0x480] sm:$0xff]
        %v1462 = vld [vmem:[#allocation8 + $0x488] sm:$0xff]
        %v1463 = vld [vmem:[#allocation8 + $0x490] sm:$0xff]
        %v1464 = vld [vmem:[#allocation8 + $0x498] sm:$0xff]
        %v1465 = vld [vmem:[#allocation8 + $0x4a0] sm:$0xff]
        %v1466 = vld [vmem:[#allocation8 + $0x4a8] sm:$0xff]
        %v1467 = vld [vmem:[#allocation8 + $0x4b0] sm:$0xff]
        %v1468 = vld [vmem:[#allocation8 + $0x4b8] sm:$0xff]
        %v1469 = vld [vmem:[#allocation8 + $0x4c0] sm:$0xff]
        %v1470 = vld [vmem:[#allocation8 + $0x4c8] sm:$0xff]
        %v1471 = vld [vmem:[#allocation8 + $0x4d0] sm:$0xff]
        %v1472 = vld [vmem:[#allocation8 + $0x4d8] sm:$0xff]
        %v1473 = vld [vmem:[#allocation8 + $0x4e0] sm:$0xff]
        %v1474 = vld [vmem:[#allocation8 + $0x4e8] sm:$0xff]
        %v1475 = vld [vmem:[#allocation8 + $0x4f0] sm:$0xff]
        %v1476 = vld [vmem:[#allocation8 + $0x4f8] sm:$0xff]
        %v1477 = vld [vmem:[#allocation8 + $0x500] sm:$0xff]
        %v1478 = vld [vmem:[#allocation8 + $0x508] sm:$0xff]
        %v1479 = vld [vmem:[#allocation8 + $0x510] sm:$0xff]
        %v1480 = vld [vmem:[#allocation8 + $0x518] sm:$0xff]
        %v1481 = vld [vmem:[#allocation8 + $0x520] sm:$0xff]
        %v1482 = vld [vmem:[#allocation8 + $0x528] sm:$0xff]
        %v1483 = vld [vmem:[#allocation8 + $0x530] sm:$0xff]
        %v1484 = vld [vmem:[#allocation8 + $0x538] sm:$0xff]
        %v1485 = vld [vmem:[#allocation8 + $0x540] sm:$0xff]
        %v1486 = vld [vmem:[#allocation8 + $0x548] sm:$0xff]
        %v1487 = vld [vmem:[#allocation8 + $0x550] sm:$0xff]
        %v1488 = vld [vmem:[#allocation8 + $0x558] sm:$0xff]
        %v1489 = vld [vmem:[#allocation8 + $0x560] sm:$0xff]
        %v1490 = vld [vmem:[#allocation8 + $0x568] sm:$0xff]
        %v1491 = vld [vmem:[#allocation8 + $0x570] sm:$0xff]
        %v1492 = vld [vmem:[#allocation8 + $0x578] sm:$0xff]
        %v1493 = vld [vmem:[#allocation8 + $0x580] sm:$0xff]
        %v1494 = vld [vmem:[#allocation8 + $0x588] sm:$0xff]
        %v1495 = vld [vmem:[#allocation8 + $0x590] sm:$0xff]
        %v1496 = vld [vmem:[#allocation8 + $0x598] sm:$0xff]
        %v1497 = vld [vmem:[#allocation8 + $0x5a0] sm:$0xff]
        %v1498 = vld [vmem:[#allocation8 + $0x5a8] sm:$0xff]
        %v1499 = vld [vmem:[#allocation8 + $0x5b0] sm:$0xff]
        %v1500 = vld [vmem:[#allocation8 + $0x5b8] sm:$0xff]
        %v1501 = vld [vmem:[#allocation8 + $0x5c0] sm:$0xff]
        %v1502 = vld [vmem:[#allocation8 + $0x5c8] sm:$0xff]
        %v1503 = vld [vmem:[#allocation8 + $0x5d0] sm:$0xff]
        %v1504 = vld [vmem:[#allocation8 + $0x5d8] sm:$0xff]
        %v1505 = vld [vmem:[#allocation8 + $0x5e0] sm:$0xff]
        %v1506 = vld [vmem:[#allocation8 + $0x5e8] sm:$0xff]
        %v1507 = vld [vmem:[#allocation8 + $0x5f0] sm:$0xff]
        %v1508 = vld [vmem:[#allocation8 + $0x5f8] sm:$0xff]
        %v1509 = vld [vmem:[#allocation8 + $0x600] sm:$0xff]
        %v1510 = vld [vmem:[#allocation8 + $0x608] sm:$0xff]
        %v1511 = vld [vmem:[#allocation8 + $0x610] sm:$0xff]
        %v1512 = vld [vmem:[#allocation8 + $0x618] sm:$0xff]
        %v1513 = vld [vmem:[#allocation8 + $0x620] sm:$0xff]
        %v1514 = vld [vmem:[#allocation8 + $0x628] sm:$0xff]
        %v1515 = vld [vmem:[#allocation8 + $0x630] sm:$0xff]
        %v1516 = vld [vmem:[#allocation8 + $0x638] sm:$0xff]
        %v1517 = vld [vmem:[#allocation8 + $0x640] sm:$0xff]
        %v1518 = vld [vmem:[#allocation8 + $0x648] sm:$0xff]
        %v1519 = vld [vmem:[#allocation8 + $0x650] sm:$0xff]
        %v1520 = vld [vmem:[#allocation8 + $0x658] sm:$0xff]
        %v1521 = vld [vmem:[#allocation8 + $0x660] sm:$0xff]
        %v1522 = vld [vmem:[#allocation8 + $0x668] sm:$0xff]
        %v1523 = vld [vmem:[#allocation8 + $0x670] sm:$0xff]
        %v1524 = vld [vmem:[#allocation8 + $0x678] sm:$0xff]
        %v1525 = vld [vmem:[#allocation10] sm:$0x1]
        %v1527 = vlaneseq
        %v1528 = vshrl.u32 %v1527, 7
        %v1529 = vsub.s32 0, %v1528
        %v1530 = vrot.slane %v1525, %v1529
        %1532 = vmatprep.subr.mxu0 0.0
        %1533 = vmatpush1.msra.mxu0 %v1317
        %1534 = vmatprep.subr.mxu0 0.0
        %1535 = vmatpush1.msra.mxu0 %v1318
        %1536 = vmatprep.subr.mxu0 0.0
        %1537 = vmatpush1.msra.mxu0 %v1319
        %1538 = vmatprep.subr.mxu0 0.0
        %1539 = vmatpush1.msra.mxu0 %v1320
        %1540 = vmatprep.subr.mxu0 0.0
        %1541 = vmatpush1.msra.mxu0 %v1321
        %1542 = vmatprep.subr.mxu0 0.0
        %1543 = vmatpush1.msra.mxu0 %v1322
        %1544 = vmatprep.subr.mxu0 0.0
        %1545 = vmatpush1.msra.mxu0 %v1323
        %1546 = vmatprep.subr.mxu0 0.0
        %1547 = vmatpush1.msra.mxu0 %v1324
        %1548 = vmatprep.subr.mxu0 0.0
        %1549 = vmatpush1.msra.mxu0 %v1325
        %1550 = vmatprep.subr.mxu0 0.0
        %1551 = vmatpush1.msra.mxu0 %v1326
        %1552 = vmatprep.subr.mxu0 0.0
        %1553 = vmatpush1.msra.mxu0 %v1327
        %1554 = vmatprep.subr.mxu0 0.0
        %1555 = vmatpush1.msra.mxu0 %v1328
        %1556 = vmatprep.subr.mxu0 0.0
        %1557 = vmatpush1.msra.mxu0 %v1329
        %1558 = vmatprep.subr.mxu0 0.0
        %1559 = vmatpush1.msra.mxu0 %v1330
        %1560 = vmatprep.subr.mxu0 0.0
        %1561 = vmatpush1.msra.mxu0 %v1331
        %1562 = vmatprep.subr.mxu0 0.0
        %1563 = vmatpush1.msra.mxu0 %v1332
        %1564 = vmatprep.subr.mxu0 0.0
        %1565 = vmatpush1.msra.mxu0 %v1333
        %1566 = vmatprep.subr.mxu0 0.0
        %1567 = vmatpush1.msra.mxu0 %v1334
        %1568 = vmatprep.subr.mxu0 0.0
        %1569 = vmatpush1.msra.mxu0 %v1335
        %1570 = vmatprep.subr.mxu0 0.0
        %1571 = vmatpush1.msra.mxu0 %v1336
        %1572 = vmatprep.subr.mxu0 0.0
        %1573 = vmatpush1.msra.mxu0 %v1337
        %1574 = vmatprep.subr.mxu0 0.0
        %1575 = vmatpush1.msra.mxu0 %v1338
        %1576 = vmatprep.subr.mxu0 0.0
        %1577 = vmatpush1.msra.mxu0 %v1339
        %1578 = vmatprep.subr.mxu0 0.0
        %1579 = vmatpush1.msra.mxu0 %v1340
        %1580 = vmatprep.subr.mxu0 0.0
        %1581 = vmatpush1.msra.mxu0 %v1341
        %1582 = vmatprep.subr.mxu0 0.0
        %1583 = vmatpush1.msra.mxu0 %v1342
        %1584 = vmatprep.subr.mxu0 0.0
        %1585 = vmatpush1.msra.mxu0 %v1343
        %1586 = vmatprep.subr.mxu0 0.0
        %1587 = vmatpush1.msra.mxu0 %v1344
        %1588 = vmatprep.subr.mxu0 0.0
        %1589 = vmatpush1.msra.mxu0 %v1345
        %1590 = vmatprep.subr.mxu0 0.0
        %1591 = vmatpush1.msra.mxu0 %v1346
        %1592 = vmatprep.subr.mxu0 0.0
        %1593 = vmatpush1.msra.mxu0 %v1347
        %1594 = vmatprep.subr.mxu0 0.0
        %1595 = vmatpush1.msra.mxu0 %v1348
        %1596 = vmatprep.mubr.f32.mxu0 %v1305
        %1597 = vmatmul.mubr.f32.gmra.mrb[0].mxu0 %v1304
        %v1598 = vpop.f32.mrb[0].mxu0
        %v1599 = vadd.f32 %v1530, %v1598
        %v1600 = vpop.f32.mrb[0].mxu0
        %1601 = vdwg.mxu0
        %1602 = vmatprep.subr.mxu0 0.0
        %1603 = vmatpush1.msra.mxu0 %v1349
        %1604 = vmatprep.subr.mxu0 0.0
        %1605 = vmatpush1.msra.mxu0 %v1350
        %1606 = vmatprep.subr.mxu0 0.0
        %1607 = vmatpush1.msra.mxu0 %v1351
        %1608 = vmatprep.subr.mxu0 0.0
        %1609 = vmatpush1.msra.mxu0 %v1352
        %1610 = vmatprep.subr.mxu0 0.0
        %1611 = vmatpush1.msra.mxu0 %v1353
        %1612 = vmatprep.subr.mxu0 0.0
        %1613 = vmatpush1.msra.mxu0 %v1354
        %1614 = vmatprep.subr.mxu0 0.0
        %1615 = vmatpush1.msra.mxu0 %v1355
        %1616 = vmatprep.subr.mxu0 0.0
        %1617 = vmatpush1.msra.mxu0 %v1356
        %1618 = vmatprep.subr.mxu0 0.0
        %1619 = vmatpush1.msra.mxu0 %v1357
        %1620 = vmatprep.subr.mxu0 0.0
        %1621 = vmatpush1.msra.mxu0 %v1358
        %1622 = vmatprep.subr.mxu0 0.0
        %1623 = vmatpush1.msra.mxu0 %v1359
        %1624 = vmatprep.subr.mxu0 0.0
        %1625 = vmatpush1.msra.mxu0 %v1360
        %1626 = vmatprep.subr.mxu0 0.0
        %1627 = vmatpush1.msra.mxu0 %v1361
        %1628 = vmatprep.subr.mxu0 0.0
        %1629 = vmatpush1.msra.mxu0 %v1362
        %1630 = vmatprep.subr.mxu0 0.0
        %1631 = vmatpush1.msra.mxu0 %v1363
        %1632 = vmatprep.subr.mxu0 0.0
        %1633 = vmatpush1.msra.mxu0 %v1364
        %1634 = vmatprep.subr.mxu0 0.0
        %1635 = vmatpush1.msra.mxu0 %v1365
        %1636 = vmatprep.subr.mxu0 0.0
        %1637 = vmatpush1.msra.mxu0 %v1366
        %1638 = vmatprep.subr.mxu0 0.0
        %1639 = vmatpush1.msra.mxu0 %v1367
        %1640 = vmatprep.subr.mxu0 0.0
        %1641 = vmatpush1.msra.mxu0 %v1368
        %1642 = vmatprep.subr.mxu0 0.0
        %1643 = vmatpush1.msra.mxu0 %v1369
        %1644 = vmatprep.subr.mxu0 0.0
        %1645 = vmatpush1.msra.mxu0 %v1370
        %1646 = vmatprep.subr.mxu0 0.0
        %1647 = vmatpush1.msra.mxu0 %v1371
        %1648 = vmatprep.subr.mxu0 0.0
        %1649 = vmatpush1.msra.mxu0 %v1372
        %1650 = vmatprep.subr.mxu0 0.0
        %1651 = vmatpush1.msra.mxu0 %v1373
        %1652 = vmatprep.subr.mxu0 0.0
        %1653 = vmatpush1.msra.mxu0 %v1374
        %1654 = vmatprep.subr.mxu0 0.0
        %1655 = vmatpush1.msra.mxu0 %v1375
        %1656 = vmatprep.subr.mxu0 0.0
        %1657 = vmatpush1.msra.mxu0 %v1376
        %1658 = vmatprep.subr.mxu0 0.0
        %1659 = vmatpush1.msra.mxu0 %v1377
        %1660 = vmatprep.subr.mxu0 0.0
        %1661 = vmatpush1.msra.mxu0 %v1378
        %1662 = vmatprep.subr.mxu0 0.0
        %1663 = vmatpush1.msra.mxu0 %v1379
        %1664 = vmatprep.subr.mxu0 0.0
        %1665 = vmatpush1.msra.mxu0 %v1380
        %1666 = vmatprep.mubr.f32.mxu0 %v1307
        %1667 = vmatmul.mubr.f32.gmra.mrb[0].mxu0 %v1306
        %v1668 = vpop.f32.mrb[0].mxu0
        %v1669 = vadd.f32 %v1599, %v1668
        %v1670 = vpop.f32.mrb[0].mxu0
        %1671 = vdwg.mxu0
        %1672 = vmatprep.subr.mxu0 0.0
        %1673 = vmatpush1.msra.mxu0 %v1381
        %1674 = vmatprep.subr.mxu0 0.0
        %1675 = vmatpush1.msra.mxu0 %v1382
        %1676 = vmatprep.subr.mxu0 0.0
        %1677 = vmatpush1.msra.mxu0 %v1383
        %1678 = vmatprep.subr.mxu0 0.0
        %1679 = vmatpush1.msra.mxu0 %v1384
        %1680 = vmatprep.subr.mxu0 0.0
        %1681 = vmatpush1.msra.mxu0 %v1385
        %1682 = vmatprep.subr.mxu0 0.0
        %1683 = vmatpush1.msra.mxu0 %v1386
        %1684 = vmatprep.subr.mxu0 0.0
        %1685 = vmatpush1.msra.mxu0 %v1387
        %1686 = vmatprep.subr.mxu0 0.0
        %1687 = vmatpush1.msra.mxu0 %v1388
        %1688 = vmatprep.subr.mxu0 0.0
        %1689 = vmatpush1.msra.mxu0 %v1389
        %1690 = vmatprep.subr.mxu0 0.0
        %1691 = vmatpush1.msra.mxu0 %v1390
        %1692 = vmatprep.subr.mxu0 0.0
        %1693 = vmatpush1.msra.mxu0 %v1391
        %1694 = vmatprep.subr.mxu0 0.0
        %1695 = vmatpush1.msra.mxu0 %v1392
        %1696 = vmatprep.subr.mxu0 0.0
        %1697 = vmatpush1.msra.mxu0 %v1393
        %1698 = vmatprep.subr.mxu0 0.0
        %1699 = vmatpush1.msra.mxu0 %v1394
        %1700 = vmatprep.subr.mxu0 0.0
        %1701 = vmatpush1.msra.mxu0 %v1395
        %1702 = vmatprep.subr.mxu0 0.0
        %1703 = vmatpush1.msra.mxu0 %v1396
        %1704 = vmatprep.subr.mxu0 0.0
        %1705 = vmatpush1.msra.mxu0 %v1397
        %1706 = vmatprep.subr.mxu0 0.0
        %1707 = vmatpush1.msra.mxu0 %v1398
        %1708 = vmatprep.subr.mxu0 0.0
        %1709 = vmatpush1.msra.mxu0 %v1399
        %1710 = vmatprep.subr.mxu0 0.0
        %1711 = vmatpush1.msra.mxu0 %v1400
        %1712 = vmatprep.subr.mxu0 0.0
        %1713 = vmatpush1.msra.mxu0 %v1401
        %1714 = vmatprep.subr.mxu0 0.0
        %1715 = vmatpush1.msra.mxu0 %v1402
        %1716 = vmatprep.subr.mxu0 0.0
        %1717 = vmatpush1.msra.mxu0 %v1403
        %1718 = vmatprep.subr.mxu0 0.0
        %1719 = vmatpush1.msra.mxu0 %v1404
        %1720 = vmatprep.subr.mxu0 0.0
        %1721 = vmatpush1.msra.mxu0 %v1405
        %1722 = vmatprep.subr.mxu0 0.0
        %1723 = vmatpush1.msra.mxu0 %v1406
        %1724 = vmatprep.subr.mxu0 0.0
        %1725 = vmatpush1.msra.mxu0 %v1407
        %1726 = vmatprep.subr.mxu0 0.0
        %1727 = vmatpush1.msra.mxu0 %v1408
        %1728 = vmatprep.subr.mxu0 0.0
        %1729 = vmatpush1.msra.mxu0 %v1409
        %1730 = vmatprep.subr.mxu0 0.0
        %1731 = vmatpush1.msra.mxu0 %v1410
        %1732 = vmatprep.subr.mxu0 0.0
        %1733 = vmatpush1.msra.mxu0 %v1411
        %1734 = vmatprep.subr.mxu0 0.0
        %1735 = vmatpush1.msra.mxu0 %v1412
        %1736 = vmatprep.mubr.f32.mxu0 %v1309
        %1737 = vmatmul.mubr.f32.gmra.mrb[0].mxu0 %v1308
        %v1738 = vpop.f32.mrb[0].mxu0
        %v1739 = vadd.f32 %v1669, %v1738
        %v1740 = vpop.f32.mrb[0].mxu0
        %1741 = vdwg.mxu0
        %1742 = vmatprep.subr.mxu0 0.0
        %1743 = vmatpush1.msra.mxu0 %v1413
        %1744 = vmatprep.subr.mxu0 0.0
        %1745 = vmatpush1.msra.mxu0 %v1414
        %1746 = vmatprep.subr.mxu0 0.0
        %1747 = vmatpush1.msra.mxu0 %v1415
        %1748 = vmatprep.subr.mxu0 0.0
        %1749 = vmatpush1.msra.mxu0 %v1416
        %1750 = vmatprep.subr.mxu0 0.0
        %1751 = vmatpush1.msra.mxu0 %v1417
        %1752 = vmatprep.subr.mxu0 0.0
        %1753 = vmatpush1.msra.mxu0 %v1418
        %1754 = vmatprep.subr.mxu0 0.0
        %1755 = vmatpush1.msra.mxu0 %v1419
        %1756 = vmatprep.subr.mxu0 0.0
        %1757 = vmatpush1.msra.mxu0 %v1420
        %1758 = vmatprep.subr.mxu0 0.0
        %1759 = vmatpush1.msra.mxu0 %v1421
        %1760 = vmatprep.subr.mxu0 0.0
        %1761 = vmatpush1.msra.mxu0 %v1422
        %1762 = vmatprep.subr.mxu0 0.0
        %1763 = vmatpush1.msra.mxu0 %v1423
        %1764 = vmatprep.subr.mxu0 0.0
        %1765 = vmatpush1.msra.mxu0 %v1424
        %1766 = vmatprep.subr.mxu0 0.0
        %1767 = vmatpush1.msra.mxu0 %v1425
        %1768 = vmatprep.subr.mxu0 0.0
        %1769 = vmatpush1.msra.mxu0 %v1426
        %1770 = vmatprep.subr.mxu0 0.0
        %1771 = vmatpush1.msra.mxu0 %v1427
        %1772 = vmatprep.subr.mxu0 0.0
        %1773 = vmatpush1.msra.mxu0 %v1428
        %1774 = vmatprep.subr.mxu0 0.0
        %1775 = vmatpush1.msra.mxu0 %v1429
        %1776 = vmatprep.subr.mxu0 0.0
        %1777 = vmatpush1.msra.mxu0 %v1430
        %1778 = vmatprep.subr.mxu0 0.0
        %1779 = vmatpush1.msra.mxu0 %v1431
        %1780 = vmatprep.subr.mxu0 0.0
        %1781 = vmatpush1.msra.mxu0 %v1432
        %1782 = vmatprep.subr.mxu0 0.0
        %1783 = vmatpush1.msra.mxu0 %v1433
        %1784 = vmatprep.subr.mxu0 0.0
        %1785 = vmatpush1.msra.mxu0 %v1434
        %1786 = vmatprep.subr.mxu0 0.0
        %1787 = vmatpush1.msra.mxu0 %v1435
        %1788 = vmatprep.subr.mxu0 0.0
        %1789 = vmatpush1.msra.mxu0 %v1436
        %1790 = vmatprep.subr.mxu0 0.0
        %1791 = vmatpush1.msra.mxu0 %v1437
        %1792 = vmatprep.subr.mxu0 0.0
        %1793 = vmatpush1.msra.mxu0 %v1438
        %1794 = vmatprep.subr.mxu0 0.0
        %1795 = vmatpush1.msra.mxu0 %v1439
        %1796 = vmatprep.subr.mxu0 0.0
        %1797 = vmatpush1.msra.mxu0 %v1440
        %1798 = vmatprep.subr.mxu0 0.0
        %1799 = vmatpush1.msra.mxu0 %v1441
        %1800 = vmatprep.subr.mxu0 0.0
        %1801 = vmatpush1.msra.mxu0 %v1442
        %1802 = vmatprep.subr.mxu0 0.0
        %1803 = vmatpush1.msra.mxu0 %v1443
        %1804 = vmatprep.subr.mxu0 0.0
        %1805 = vmatpush1.msra.mxu0 %v1444
        %1806 = vmatprep.mubr.f32.mxu0 %v1311
        %1807 = vmatmul.mubr.f32.gmra.mrb[0].mxu0 %v1310
        %v1808 = vpop.f32.mrb[0].mxu0
        %v1809 = vadd.f32 %v1739, %v1808
        %v1810 = vpop.f32.mrb[0].mxu0
        %1811 = vdwg.mxu0
        %1812 = vmatprep.subr.mxu0 0.0
        %1813 = vmatpush1.msra.mxu0 %v1445
        %1814 = vmatprep.subr.mxu0 0.0
        %1815 = vmatpush1.msra.mxu0 %v1446
        %1816 = vmatprep.subr.mxu0 0.0
        %1817 = vmatpush1.msra.mxu0 %v1447
        %1818 = vmatprep.subr.mxu0 0.0
        %1819 = vmatpush1.msra.mxu0 %v1448
        %1820 = vmatprep.subr.mxu0 0.0
        %1821 = vmatpush1.msra.mxu0 %v1449
        %1822 = vmatprep.subr.mxu0 0.0
        %1823 = vmatpush1.msra.mxu0 %v1450
        %1824 = vmatprep.subr.mxu0 0.0
        %1825 = vmatpush1.msra.mxu0 %v1451
        %1826 = vmatprep.subr.mxu0 0.0
        %1827 = vmatpush1.msra.mxu0 %v1452
        %1828 = vmatprep.subr.mxu0 0.0
        %1829 = vmatpush1.msra.mxu0 %v1453
        %1830 = vmatprep.subr.mxu0 0.0
        %1831 = vmatpush1.msra.mxu0 %v1454
        %1832 = vmatprep.subr.mxu0 0.0
        %1833 = vmatpush1.msra.mxu0 %v1455
        %1834 = vmatprep.subr.mxu0 0.0
        %1835 = vmatpush1.msra.mxu0 %v1456
        %1836 = vmatprep.subr.mxu0 0.0
        %1837 = vmatpush1.msra.mxu0 %v1457
        %1838 = vmatprep.subr.mxu0 0.0
        %1839 = vmatpush1.msra.mxu0 %v1458
        %1840 = vmatprep.subr.mxu0 0.0
        %1841 = vmatpush1.msra.mxu0 %v1459
        %1842 = vmatprep.subr.mxu0 0.0
        %1843 = vmatpush1.msra.mxu0 %v1460
        %1844 = vmatprep.subr.mxu0 0.0
        %1845 = vmatpush1.msra.mxu0 %v1461
        %1846 = vmatprep.subr.mxu0 0.0
        %1847 = vmatpush1.msra.mxu0 %v1462
        %1848 = vmatprep.subr.mxu0 0.0
        %1849 = vmatpush1.msra.mxu0 %v1463
        %1850 = vmatprep.subr.mxu0 0.0
        %1851 = vmatpush1.msra.mxu0 %v1464
        %1852 = vmatprep.subr.mxu0 0.0
        %1853 = vmatpush1.msra.mxu0 %v1465
        %1854 = vmatprep.subr.mxu0 0.0
        %1855 = vmatpush1.msra.mxu0 %v1466
        %1856 = vmatprep.subr.mxu0 0.0
        %1857 = vmatpush1.msra.mxu0 %v1467
        %1858 = vmatprep.subr.mxu0 0.0
        %1859 = vmatpush1.msra.mxu0 %v1468
        %1860 = vmatprep.subr.mxu0 0.0
        %1861 = vmatpush1.msra.mxu0 %v1469
        %1862 = vmatprep.subr.mxu0 0.0
        %1863 = vmatpush1.msra.mxu0 %v1470
        %1864 = vmatprep.subr.mxu0 0.0
        %1865 = vmatpush1.msra.mxu0 %v1471
        %1866 = vmatprep.subr.mxu0 0.0
        %1867 = vmatpush1.msra.mxu0 %v1472
        %1868 = vmatprep.subr.mxu0 0.0
        %1869 = vmatpush1.msra.mxu0 %v1473
        %1870 = vmatprep.subr.mxu0 0.0
        %1871 = vmatpush1.msra.mxu0 %v1474
        %1872 = vmatprep.subr.mxu0 0.0
        %1873 = vmatpush1.msra.mxu0 %v1475
        %1874 = vmatprep.subr.mxu0 0.0
        %1875 = vmatpush1.msra.mxu0 %v1476
        %1876 = vmatprep.mubr.f32.mxu0 %v1313
        %1877 = vmatmul.mubr.f32.gmra.mrb[0].mxu0 %v1312
        %v1878 = vpop.f32.mrb[0].mxu0
        %v1879 = vadd.f32 %v1809, %v1878
        %v1880 = vpop.f32.mrb[0].mxu0
        %1881 = vdwg.mxu0
        %1882 = vmatprep.subr.mxu0 0.0
        %1883 = vmatpush1.msra.mxu0 %v1477
        %1884 = vmatprep.subr.mxu0 0.0
        %1885 = vmatpush1.msra.mxu0 %v1478
        %1886 = vmatprep.subr.mxu0 0.0
        %1887 = vmatpush1.msra.mxu0 %v1479
        %1888 = vmatprep.subr.mxu0 0.0
        %1889 = vmatpush1.msra.mxu0 %v1480
        %1890 = vmatprep.subr.mxu0 0.0
        %1891 = vmatpush1.msra.mxu0 %v1481
        %1892 = vmatprep.subr.mxu0 0.0
        %1893 = vmatpush1.msra.mxu0 %v1482
        %1894 = vmatprep.subr.mxu0 0.0
        %1895 = vmatpush1.msra.mxu0 %v1483
        %1896 = vmatprep.subr.mxu0 0.0
        %1897 = vmatpush1.msra.mxu0 %v1484
        %1898 = vmatprep.subr.mxu0 0.0
        %1899 = vmatpush1.msra.mxu0 %v1485
        %1900 = vmatprep.subr.mxu0 0.0
        %1901 = vmatpush1.msra.mxu0 %v1486
        %1902 = vmatprep.subr.mxu0 0.0
        %1903 = vmatpush1.msra.mxu0 %v1487
        %1904 = vmatprep.subr.mxu0 0.0
        %1905 = vmatpush1.msra.mxu0 %v1488
        %1906 = vmatprep.subr.mxu0 0.0
        %1907 = vmatpush1.msra.mxu0 %v1489
        %1908 = vmatprep.subr.mxu0 0.0
        %1909 = vmatpush1.msra.mxu0 %v1490
        %1910 = vmatprep.subr.mxu0 0.0
        %1911 = vmatpush1.msra.mxu0 %v1491
        %1912 = vmatprep.subr.mxu0 0.0
        %1913 = vmatpush1.msra.mxu0 %v1492
        %1914 = vmatprep.subr.mxu0 0.0
        %1915 = vmatpush1.msra.mxu0 %v1493
        %1916 = vmatprep.subr.mxu0 0.0
        %1917 = vmatpush1.msra.mxu0 %v1494
        %1918 = vmatprep.subr.mxu0 0.0
        %1919 = vmatpush1.msra.mxu0 %v1495
        %1920 = vmatprep.subr.mxu0 0.0
        %1921 = vmatpush1.msra.mxu0 %v1496
        %1922 = vmatprep.subr.mxu0 0.0
        %1923 = vmatpush1.msra.mxu0 %v1497
        %1924 = vmatprep.subr.mxu0 0.0
        %1925 = vmatpush1.msra.mxu0 %v1498
        %1926 = vmatprep.subr.mxu0 0.0
        %1927 = vmatpush1.msra.mxu0 %v1499
        %1928 = vmatprep.subr.mxu0 0.0
        %1929 = vmatpush1.msra.mxu0 %v1500
        %1930 = vmatprep.subr.mxu0 0.0
        %1931 = vmatpush1.msra.mxu0 %v1501
        %1932 = vmatprep.subr.mxu0 0.0
        %1933 = vmatpush1.msra.mxu0 %v1502
        %1934 = vmatprep.subr.mxu0 0.0
        %1935 = vmatpush1.msra.mxu0 %v1503
        %1936 = vmatprep.subr.mxu0 0.0
        %1937 = vmatpush1.msra.mxu0 %v1504
        %1938 = vmatprep.subr.mxu0 0.0
        %1939 = vmatpush1.msra.mxu0 %v1505
        %1940 = vmatprep.subr.mxu0 0.0
        %1941 = vmatpush1.msra.mxu0 %v1506
        %1942 = vmatprep.subr.mxu0 0.0
        %1943 = vmatpush1.msra.mxu0 %v1507
        %1944 = vmatprep.subr.mxu0 0.0
        %1945 = vmatpush1.msra.mxu0 %v1508
        %1946 = vmatprep.mubr.f32.mxu0 %v1315
        %1947 = vmatmul.mubr.f32.gmra.mrb[0].mxu0 %v1314
        %v1948 = vpop.f32.mrb[0].mxu0
        %v1949 = vadd.f32 %v1879, %v1948
        %v1950 = vpop.f32.mrb[0].mxu0
        %1951 = vdwg.mxu0
        %1952 = vmatprep.subr.mxu0 0.0
        %1953 = vmatpush1.msra.mxu0 %v1509
        %1954 = vmatprep.subr.mxu0 0.0
        %1955 = vmatpush1.msra.mxu0 %v1510
        %1956 = vmatprep.subr.mxu0 0.0
        %1957 = vmatpush1.msra.mxu0 %v1511
        %1958 = vmatprep.subr.mxu0 0.0
        %1959 = vmatpush1.msra.mxu0 %v1512
        %1960 = vmatprep.subr.mxu0 0.0
        %1961 = vmatpush1.msra.mxu0 %v1513
        %1962 = vmatprep.subr.mxu0 0.0
        %1963 = vmatpush1.msra.mxu0 %v1514
        %1964 = vmatprep.subr.mxu0 0.0
        %1965 = vmatpush1.msra.mxu0 %v1515
        %1966 = vmatprep.subr.mxu0 0.0
        %1967 = vmatpush1.msra.mxu0 %v1516
        %1968 = vmatprep.subr.mxu0 0.0
        %1969 = vmatpush1.msra.mxu0 %v1517
        %1970 = vmatprep.subr.mxu0 0.0
        %1971 = vmatpush1.msra.mxu0 %v1518
        %1972 = vmatprep.subr.mxu0 0.0
        %1973 = vmatpush1.msra.mxu0 %v1519
        %1974 = vmatprep.subr.mxu0 0.0
        %1975 = vmatpush1.msra.mxu0 %v1520
        %1976 = vmatprep.subr.mxu0 0.0
        %1977 = vmatpush1.msra.mxu0 %v1521
        %1978 = vmatprep.subr.mxu0 0.0
        %1979 = vmatpush1.msra.mxu0 %v1522
        %1980 = vmatprep.subr.mxu0 0.0
        %1981 = vmatpush1.msra.mxu0 %v1523
        %1982 = vmatprep.subr.mxu0 0.0
        %1983 = vmatpush1.msra.mxu0 %v1524
        %1984 = vmatprep.subr.mxu0 0.0
        %1985 = vmatpush1.msra.mxu0 0.0
        %1986 = vmatprep.subr.mxu0 0.0
        %1987 = vmatpush1.msra.mxu0 0.0
        %1988 = vmatprep.subr.mxu0 0.0
        %1989 = vmatpush1.msra.mxu0 0.0
        %1990 = vmatprep.subr.mxu0 0.0
        %1991 = vmatpush1.msra.mxu0 0.0
        %1992 = vmatprep.subr.mxu0 0.0
        %1993 = vmatpush1.msra.mxu0 0.0
        %1994 = vmatprep.subr.mxu0 0.0
        %1995 = vmatpush1.msra.mxu0 0.0
        %1996 = vmatprep.subr.mxu0 0.0
        %1997 = vmatpush1.msra.mxu0 0.0
        %1998 = vmatprep.subr.mxu0 0.0
        %1999 = vmatpush1.msra.mxu0 0.0
        %2000 = vmatprep.subr.mxu0 0.0
        %2001 = vmatpush1.msra.mxu0 0.0
        %2002 = vmatprep.subr.mxu0 0.0
        %2003 = vmatpush1.msra.mxu0 0.0
        %2004 = vmatprep.subr.mxu0 0.0
        %2005 = vmatpush1.msra.mxu0 0.0
        %2006 = vmatprep.subr.mxu0 0.0
        %2007 = vmatpush1.msra.mxu0 0.0
        %2008 = vmatprep.subr.mxu0 0.0
        %2009 = vmatpush1.msra.mxu0 0.0
        %2010 = vmatprep.subr.mxu0 0.0
        %2011 = vmatpush1.msra.mxu0 0.0
        %2012 = vmatprep.subr.mxu0 0.0
        %2013 = vmatpush1.msra.mxu0 0.0
        %2014 = vmatprep.subr.mxu0 0.0
        %2015 = vmatpush1.msra.mxu0 0.0
        %2016 = vmatprep.mubr.f32.mxu0 0.0
        %2017 = vmatmul.mubr.f32.gmra.mrb[0].mxu0 %v1316
        %v2018 = vpop.f32.mrb[0].mxu0
        %v2019 = vadd.f32 %v1949, %v2018
        %v2020 = vpop.f32.mrb[0].mxu0
        %2021 = vdwg.mxu0
        %2022 = vst [vmem:[%s294] sm:$0xff] %v2019
        %s2023 = sand.u32 %s142, 1
        %s2024 = scalar_lea.sflag [#allocation4], %s2023
        %s2025 = sand.u32 %s142, 1
        %s2026 = smul.addr %s2025, 8
        %s2027 = scalar_lea.vmem [#allocation11], %s2026
        // Predicated region
        $region61: #{tpu_custom_call.1} parent=39 // pred_check
          %p2028 = pneg %p152
        $region62: #{tpu_custom_call.1} parent=39 // pred_check_branch
          %2030 = sbr.rel (%p2028) target = $region64
        $region63: #{tpu_custom_call.1} parent=39 // pred_region
          %s2032 = ssub.s32 128, 128
          %2033 = vsyncadd %s2024, %s2032
          %s2034 = smul.addr %s24, 128
          %s2035 = scalar_lea.hbm %s5, %s2034
          %s2037 = sshll.u32 %s2027, 4
          %s2038 = int_to_ptr.vmem [resolvable:$true] %s2037
          %2040 = dma.vmem_to_hbm [thread:$0]  %s2038, 128, %s2035, %s2024
        $region64: #{tpu_custom_call.1} parent=39 // pred_fallthru
          _
      $region40: #{tpu_custom_call.1} parent=5 // pred_fallthru
        _
      %p2041 = scmp.le.s32.totalorder 2, %s19
      // Predicated region
      $region65: #{tpu_custom_call.1} parent=5 // pred_check
        %p2042 = pneg %p2041
      $region66: #{tpu_custom_call.1} parent=5 // pred_check_branch
        %2044 = sbr.rel (%p2042) target = $region68
      $region67: #{tpu_custom_call.1} parent=5 // pred_region
        %s2045 = ssub.s32 %s19, 2
        // Predicated region
        $region69: #{tpu_custom_call.1} parent=67 // pred_check
          %p2046 = pneg %p158
        $region70: #{tpu_custom_call.1} parent=67 // pred_check_branch
          %2048 = sbr.rel (%p2046) target = $region72
        $region71: #{tpu_custom_call.1} parent=67 // pred_region
          %s2049 = sand.u32 %s143, 1
          %s2050 = scalar_lea.sflag [#allocation4], %s2049
          %s2051 = sand.u32 %s143, 1
          %s2052 = smul.addr %s2051, 8
          %s2053 = scalar_lea.vmem [#allocation11], %s2052
          %2054 = dma.done %s2050, 128
        $region72: #{tpu_custom_call.1} parent=67 // pred_fallthru
          _
      $region68: #{tpu_custom_call.1} parent=5 // pred_fallthru
        _
    $region6: #{tpu_custom_call.1} parent=1 // loop_footer
      %s23 = sadd.s32 1, %s19
    $region7: #{tpu_custom_call.1} parent=1 // loop_footer_branch
      %18 = sbr.rel target = $region3
    $region8: #{tpu_custom_call.1} parent=1 // loop_exit
      _
    %2055 = vsyncpa [#allocation3], 1
    %s2056 = scalar_lea.sflag [#allocation3], 1
    %2057 = vsyncpa %s2056, 1
    %2058 = vsyncpa [#allocation6], 1
    %2059 = vsyncpa [#allocation9], 1
    %2060 = vsyncpa [#allocation4], 1
    %s2061 = scalar_lea.sflag [#allocation4], 1
    %2062 = vsyncpa %s2061, 1

</llo_original>
